<compile_context>
chip_gen: v5e
topology: v5e:2x2
jax: 0.10.0
libtpu: 0.0.40
codegen_flags: <defaults>
</compile_context>

<pallas_src>
import numpy as np

import jax
import jax.numpy as jnp
from jax.experimental import pallas as pl
from jax.experimental.pallas import tpu as pltpu


# ----------------------------------------------------------------------------
# Fused Pallas kernel: the whole LipschitzCNN forward, one image per grid step
# ----------------------------------------------------------------------------
def make_fused_kernel(H: int, layer_cfg):
    """layer_cfg: tuple of (kh, Lin, Lout, scratch_idx) per layer.
    Lin/Lout are lane widths (W * padded channel count) of the layer input/output;
    scratch_idx indexes the VMEM LHS-scratch for kh>1 layers (None for 1x1 convs)."""
    n_layers = len(layer_cfg)

    def kernel(*refs):
        x_ref = refs[0]
        r_refs = refs[1:1 + n_layers]                    # Toeplitz weights (bf16)
        b_refs = refs[1 + n_layers:1 + 2 * n_layers]     # W-tiled biases   (f32)
        sp_ref = refs[1 + 2 * n_layers]                  # softplus(beta) per layer (SMEM)
        o_ref = refs[2 + 2 * n_layers]
        scratch = refs[3 + 2 * n_layers:]                # LHS scratches (VMEM, f32)

        act = x_ref[0]                                   # (H, Lin0) f32, unpadded
        for i, (kh, lin, lout, sidx) in enumerate(layer_cfg):
            ph = kh // 2
            # Swish in f32 (the /1.1 factor is folded into the Toeplitz weight).
            act = act * jax.nn.sigmoid(act * sp_ref[i])

            if kh > 1:
                # Build the K-merged LHS: tap di occupies lane block [di*lin,(di+1)*lin)
                # and is the activation shifted by (di - ph) rows, zero-filled at the
                # H boundary (== the conv's zero padding in H).
                lhs_ref = scratch[sidx]                  # (H, kh*lin) f32
                for di in range(kh):
                    s = di - ph                          # row shift for this tap
                    lo = max(0, -s)
                    hi = min(H, H - s)
                    col = slice(di * lin, (di + 1) * lin)
                    if lo > 0:
                        lhs_ref[0:lo, col] = jnp.zeros((lo, lin), jnp.float32)
                    if hi < H:
                        lhs_ref[hi:H, col] = jnp.zeros((H - hi, lin), jnp.float32)
                    lhs_ref[lo:hi, col] = act[lo + s:hi + s, :]
                lhs = lhs_ref[...]
            else:
                lhs = act                                # 1x1 conv: no padding/taps

            # Single MXU matmul per layer, bf16 operands, f32 accumulation.
            act = jnp.dot(lhs.astype(jnp.bfloat16), r_refs[i][...],
                          preferred_element_type=jnp.float32) + b_refs[i][...]

        o_ref[0] = act.astype(o_ref.dtype)

    return kernel


# ----------------------------------------------------------------------------
# One-time host-side preprocessing (layout + Toeplitz weight expansion)
# ----------------------------------------------------------------------------
def _lane_channels(C: int, W: int) -> int:
    """Smallest C' >= C such that W*C' is a multiple of 128 (lane-dense layout).
    Falls back to C (still correct, just not lane-dense) if no small pad exists."""
    c = C
    while (W * c) % 128 != 0:
        c += 1
        if c > C + 128:
            return C
    return c


def expand_conv_weight(w_oihw: np.ndarray, W: int, cin_lane: int, cout_lane: int,
                       scale: float) -> np.ndarray:
    """Toeplitz expansion of a same-padding stride-1 conv into a single RHS.

    Returns R of shape (kh * W * cin_lane, W * cout_lane) such that, with the
    K-merged LHS built from row-shifted activations (tap di in lane block di),
      Y[h, w*cout_lane + co] = (LHS @ R)[h, w*cout_lane + co]
                             = conv2d(x, w, padding=k//2)[co, h, w].
    W-direction zero padding is handled by omitting out-of-range taps; padded
    (dummy) channels get zero rows/columns.  `scale` folds the Swish 1/1.1."""
    Cout, Cin, kh, kw = w_oihw.shape
    pw = kw // 2
    w_np = np.asarray(w_oihw, np.float32) * scale
    R = np.zeros((kh, W * cin_lane, W * cout_lane), np.float32)
    for di in range(kh):
        for dj in range(kw):
            for w in range(W):
                wi = w + dj - pw
                if 0 <= wi < W:
                    R[di,
                      wi * cin_lane: wi * cin_lane + Cin,
                      w * cout_lane: w * cout_lane + Cout] = w_np[:, :, di, dj].T
    return R.reshape(kh * W * cin_lane, W * cout_lane)


# ----------------------------------------------------------------------------
# Forward pass: one fused pallas_call over the whole network
# ----------------------------------------------------------------------------
def lipschitz_cnn_forward(x_nchw, params):
    """params: list of (w_oihw, bias, beta) per layer (weights already normalized)."""
    N, C0, H, W = x_nchw.shape
    n_layers = len(params)

    # ---- one-time weight preprocessing ----
    lane_in0 = _lane_channels(C0, W)
    cur_lane = lane_in0
    r_list, b_list, sp_list = [], [], []
    layer_cfg = []
    scratch_shapes = []
    for (w_oihw, bias, beta) in params:
        Cout, Cin, kh, kw = map(int, w_oihw.shape)
        lane_out = _lane_channels(Cout, W)
        R = expand_conv_weight(np.asarray(w_oihw, np.float32), W, cur_lane, lane_out,
                               scale=1.0 / 1.1)              # fold Swish /1.1 into W
        r_list.append(jnp.asarray(R, jnp.bfloat16))           # bf16 MXU operand
        b_lane = np.zeros((lane_out,), np.float32)
        b_lane[:Cout] = np.asarray(bias, np.float32)
        b_list.append(jnp.asarray(np.tile(b_lane, W).reshape(1, W * lane_out)))
        sp_list.append(jax.nn.softplus(jnp.asarray(beta, jnp.float32).reshape(())))
        if kh > 1:
            sidx = len(scratch_shapes)
            scratch_shapes.append(pltpu.VMEM((H, kh * W * cur_lane), jnp.float32))
        else:
            sidx = None
        layer_cfg.append((kh, W * cur_lane, W * lane_out, sidx))
        cur_lane = lane_out
    sp = jnp.stack(sp_list)                                   # (n_layers,) -> SMEM
    lane_last = cur_lane
    cout_last = int(params[-1][0].shape[0])

    # ---- one-time input relayout: NCHW -> lane-dense (N, H, W*CinL) ----
    x = jnp.transpose(x_nchw, (0, 2, 3, 1)).astype(jnp.float32)        # NHWC
    x = jnp.pad(x, ((0, 0), (0, 0), (0, 0), (0, lane_in0 - C0)))       # pad channels
    x = x.reshape(N, H, W * lane_in0)

    grid_spec = pltpu.PrefetchScalarGridSpec(
        num_scalar_prefetch=0,
        grid=(N,),
        in_specs=(
            [pl.BlockSpec((1, H, W * lane_in0), lambda n: (n, 0, 0))]
            + [pl.BlockSpec(r.shape, lambda n: (0, 0)) for r in r_list]
            + [pl.BlockSpec(b.shape, lambda n: (0, 0)) for b in b_list]
            + [pl.BlockSpec(memory_space=pltpu.MemorySpace.SMEM)]
        ),
        out_specs=pl.BlockSpec((1, H, W * lane_last), lambda n: (n, 0, 0)),
        scratch_shapes=scratch_shapes,
    )

    out = pl.pallas_call(
        make_fused_kernel(H, tuple(layer_cfg)),
        out_shape=jax.ShapeDtypeStruct((N, H, W * lane_last), jnp.float32),
        grid_spec=grid_spec,
        compiler_params=pltpu.CompilerParams(dimension_semantics=("parallel",)),
    )(x, *r_list, *b_list, sp)

    # ---- one-time output relayout: strip channel padding, back to NCHW ----
    out = out.reshape(N, H, W, lane_last)[..., :cout_last]
    return jnp.transpose(out, (0, 3, 1, 2))


# ----------------------------------------------------------------------------
# Parameter setup glue: InducedNormConv2d spectral normalization (power iter).
# One-time weight preprocessing, done in plain JAX (not the data hot path).
# ----------------------------------------------------------------------------
def induced_norm_normalize(w_oihw, coeff, n_iter, spatial, key):
    Cout, Cin, kh, kw = w_oihw.shape
    H, W = spatial
    ph, pw = kh // 2, kw // 2
    dn = ("NCHW", "OIHW", "NCHW")

    def fwd(v):   # (1, Cin, H, W) -> (1, Cout, H, W)
        return jax.lax.conv_general_dilated(
            v, w_oihw, (1, 1), ((ph, ph), (pw, pw)), dimension_numbers=dn)

    w_adj = jnp.transpose(w_oihw[:, :, ::-1, ::-1], (1, 0, 2, 3))

    def bwd(u):   # adjoint: (1, Cout, H, W) -> (1, Cin, H, W)
        return jax.lax.conv_general_dilated(
            u, w_adj, (1, 1), ((ph, ph), (pw, pw)), dimension_numbers=dn)

    u = jax.random.normal(key, (1, Cout, H, W), jnp.float32)
    u = u / jnp.linalg.norm(u)
    v = bwd(u)
    v = v / jnp.maximum(jnp.linalg.norm(v), 1e-12)
    for _ in range(n_iter):
        v = bwd(u)
        v = v / jnp.maximum(jnp.linalg.norm(v), 1e-12)
        u = fwd(v)
        u = u / jnp.maximum(jnp.linalg.norm(u), 1e-12)
    sigma = jnp.sum(u * fwd(v))
    factor = jnp.maximum(1.0, sigma / coeff)
    return w_oihw / factor


# ----------------------------------------------------------------------------
# Pure-JAX reference (correctness check against the fused Pallas kernel)
# ----------------------------------------------------------------------------
def reference_forward(x_nchw, params):
    y = x_nchw
    for (w_oihw, bias, beta) in params:
        sp = jax.nn.softplus(beta[0])
        y = y * jax.nn.sigmoid(y * sp) / 1.1
        kh, kw = w_oihw.shape[2], w_oihw.shape[3]
        y = jax.lax.conv_general_dilated(
            y, w_oihw, (1, 1), ((kh // 2, kh // 2), (kw // 2, kw // 2)),
            dimension_numbers=("NCHW", "OIHW", "NCHW"))
        y = y + bias.reshape(1, -1, 1, 1)
    return y


if __name__ == "__main__":
    # LipschitzCNN(channels=[4,16,16,4], kernel_size=[3,1,3], lipschitz_const=0.97,
    #              max_lipschitz_iter=5, init_zeros=True)
    channels = [4, 16, 16, 4]
    kernel_size = [3, 1, 3]
    lipschitz_const = 0.97
    max_lipschitz_iter = 5
    init_zeros = True

    N, H, W = 2, 16, 16
    keys = jax.random.split(jax.random.PRNGKey(0), 1 + 3 * len(kernel_size))
    x = jax.random.normal(keys[0], (N, channels[0], H, W), jnp.float32)  # NCHW

    params = []
    for i, k in enumerate(kernel_size):
        cin, cout = channels[i], channels[i + 1]
        kw_key, kb_key, ku_key = keys[1 + 3 * i], keys[2 + 3 * i], keys[3 + 3 * i]
        fan_in = cin * k * k
        w = jax.random.normal(kw_key, (cout, cin, k, k), jnp.float32) / np.sqrt(fan_in)
        if init_zeros and i == len(kernel_size) - 1:
            w = w * 1e-3                      # approx-zero init of last layer
        b = jax.random.normal(kb_key, (cout,), jnp.float32) * 0.01
        w = induced_norm_normalize(w, lipschitz_const, max_lipschitz_iter, (H, W), ku_key)
        beta = jnp.array([0.5], jnp.float32)  # Swish beta init
        params.append((w, b, beta))

    out = lipschitz_cnn_forward(x, params)
    out = jax.block_until_ready(out)

    ref = reference_forward(x, params)
    assert out.shape == (N, channels[-1], H, W), out.shape
    max_err = float(jnp.max(jnp.abs(out - ref)))
    # bf16 MXU operands with f32 accumulation vs the pure-f32 reference.
    assert jnp.allclose(out, ref, atol=1e-3, rtol=1e-3), max_err

    print("KERNEL_OK")
</pallas_src>

<mosaic_0001>
module attributes {stable_mosaic.version = 11 : i64} {
  func.func @kernel(%arg0: i32, %arg1: memref<1x16x128xf32, #tpu.memory_space<vmem>>, %arg2: memref<384x256xbf16, #tpu.memory_space<vmem>>, %arg3: memref<256x256xbf16, #tpu.memory_space<vmem>>, %arg4: memref<768x128xbf16, #tpu.memory_space<vmem>>, %arg5: memref<1x256xf32, #tpu.memory_space<vmem>>, %arg6: memref<1x256xf32, #tpu.memory_space<vmem>>, %arg7: memref<1x128xf32, #tpu.memory_space<vmem>>, %arg8: memref<3xf32, #tpu.memory_space<smem>>, %arg9: memref<1x16x128xf32, #tpu.memory_space<vmem>>, %arg10: memref<16x384xf32, #tpu.memory_space<vmem>>, %arg11: memref<16x768xf32, #tpu.memory_space<vmem>>) attributes {dimension_semantics = [#tpu.dimension_semantics<parallel>], iteration_bounds = array<i64: 2>, scalar_prefetch = 0 : i64, scratch_operands = 2 : i64, tpu.core_type = #tpu.core_type<tc>, window_params = [{transform_indices = @transform_0, window_bounds = array<i64: 1, 16, 128>}, {pipeline_mode = #tpu.pipeline_mode<synchronous>, transform_indices = @transform_1, window_bounds = array<i64: 384, 256>}, {pipeline_mode = #tpu.pipeline_mode<synchronous>, transform_indices = @transform_2, window_bounds = array<i64: 256, 256>}, {pipeline_mode = #tpu.pipeline_mode<synchronous>, transform_indices = @transform_3, window_bounds = array<i64: 768, 128>}, {pipeline_mode = #tpu.pipeline_mode<synchronous>, transform_indices = @transform_4, window_bounds = array<i64: 1, 256>}, {pipeline_mode = #tpu.pipeline_mode<synchronous>, transform_indices = @transform_5, window_bounds = array<i64: 1, 256>}, {pipeline_mode = #tpu.pipeline_mode<synchronous>, transform_indices = @transform_6, window_bounds = array<i64: 1, 128>}, {transform_indices = @transform_7, window_bounds = array<i64: 3>}, {transform_indices = @transform_8, window_bounds = array<i64: 1, 16, 128>}]} {
    %c0 = arith.constant 0 : index
    %c0_0 = arith.constant 0 : index
    %c0_1 = arith.constant 0 : index
    %0 = vector.load %arg1[%c0, %c0_0, %c0_1] : memref<1x16x128xf32, #tpu.memory_space<vmem>>, vector<1x16x128xf32>
    %1 = vector.shape_cast %0 : vector<1x16x128xf32> to vector<16x128xf32>
    %c0_2 = arith.constant 0 : index
    %2 = memref.load %arg8[%c0_2] : memref<3xf32, #tpu.memory_space<smem>>
    %3 = vector.broadcast %2 : f32 to vector<16x128xf32>
    %4 = arith.mulf %1, %3 : vector<16x128xf32>
    %5 = arith.negf %4 : vector<16x128xf32>
    %6 = math.exp %5 : vector<16x128xf32>
    %cst = arith.constant 1.000000e+00 : f32
    %7 = vector.broadcast %cst : f32 to vector<16x128xf32>
    %8 = arith.addf %7, %6 : vector<16x128xf32>
    %9 = arith.divf %7, %8 : vector<16x128xf32>
    %10 = arith.mulf %1, %9 : vector<16x128xf32>
    %cst_3 = arith.constant 0.000000e+00 : f32
    %11 = vector.broadcast %cst_3 : f32 to vector<1x128xf32>
    %c0_4 = arith.constant 0 : index
    %c0_5 = arith.constant 0 : index
    %12 = vector.load %arg10[%c0_4, %c0_5] : memref<16x384xf32, #tpu.memory_space<vmem>>, vector<1x128xf32>
    tpu.vector_store %arg10[%c0_4, %c0_5], %11 {strides = array<i32>} : memref<16x384xf32, #tpu.memory_space<vmem>>, vector<1x128xf32>,
    %13 = vector.extract_strided_slice %10 {offsets = [0, 0], sizes = [15, 128], strides = [1, 1]} : vector<16x128xf32> to vector<15x128xf32>
    %c1 = arith.constant 1 : index
    %c0_6 = arith.constant 0 : index
    %14 = vector.load %arg10[%c1, %c0_6] : memref<16x384xf32, #tpu.memory_space<vmem>>, vector<15x128xf32>
    tpu.vector_store %arg10[%c1, %c0_6], %13 {strides = array<i32>} : memref<16x384xf32, #tpu.memory_space<vmem>>, vector<15x128xf32>,
    %c0_7 = arith.constant 0 : index
    %c128 = arith.constant 128 : index
    %15 = vector.load %arg10[%c0_7, %c128] : memref<16x384xf32, #tpu.memory_space<vmem>>, vector<16x128xf32>
    tpu.vector_store %arg10[%c0_7, %c128], %10 {strides = array<i32>} : memref<16x384xf32, #tpu.memory_space<vmem>>, vector<16x128xf32>,
    %cst_8 = arith.constant 0.000000e+00 : f32
    %16 = vector.broadcast %cst_8 : f32 to vector<1x128xf32>
    %c15 = arith.constant 15 : index
    %c256 = arith.constant 256 : index
    %17 = vector.load %arg10[%c15, %c256] : memref<16x384xf32, #tpu.memory_space<vmem>>, vector<1x128xf32>
    tpu.vector_store %arg10[%c15, %c256], %16 {strides = array<i32>} : memref<16x384xf32, #tpu.memory_space<vmem>>, vector<1x128xf32>,
    %18 = vector.extract_strided_slice %10 {offsets = [1, 0], sizes = [15, 128], strides = [1, 1]} : vector<16x128xf32> to vector<15x128xf32>
    %c0_9 = arith.constant 0 : index
    %c256_10 = arith.constant 256 : index
    %19 = vector.load %arg10[%c0_9, %c256_10] : memref<16x384xf32, #tpu.memory_space<vmem>>, vector<15x128xf32>
    tpu.vector_store %arg10[%c0_9, %c256_10], %18 {strides = array<i32>} : memref<16x384xf32, #tpu.memory_space<vmem>>, vector<15x128xf32>,
    %c0_11 = arith.constant 0 : index
    %c0_12 = arith.constant 0 : index
    %20 = vector.load %arg10[%c0_11, %c0_12] : memref<16x384xf32, #tpu.memory_space<vmem>>, vector<16x384xf32>
    %21 = arith.truncf %20 : vector<16x384xf32> to vector<16x384xbf16>
    %c0_13 = arith.constant 0 : index
    %c0_14 = arith.constant 0 : index
    %22 = vector.load %arg2[%c0_13, %c0_14] : memref<384x256xbf16, #tpu.memory_space<vmem>>, vector<384x256xbf16>
    %cst_15 = arith.constant dense<0.000000e+00> : vector<16x256xf32>
    %23 = tpu.matmul %21, %22, %cst_15 {dimension_numbers = #tpu.dot_dimension_numbers<[1], [0], [0], [1], [0, 0, 1, 1], [], []>} : vector<16x384xbf16>, vector<384x256xbf16>, vector<16x256xf32> -> vector<16x256xf32>
    %c0_16 = arith.constant 0 : index
    %c0_17 = arith.constant 0 : index
    %24 = vector.load %arg5[%c0_16, %c0_17] : memref<1x256xf32, #tpu.memory_space<vmem>>, vector<1x256xf32>
    %25 = vector.broadcast %24 : vector<1x256xf32> to vector<16x256xf32>
    %26 = arith.addf %23, %25 : vector<16x256xf32>
    %c1_18 = arith.constant 1 : index
    %27 = memref.load %arg8[%c1_18] : memref<3xf32, #tpu.memory_space<smem>>
    %28 = vector.broadcast %27 : f32 to vector<16x256xf32>
    %29 = arith.mulf %26, %28 : vector<16x256xf32>
    %30 = arith.negf %29 : vector<16x256xf32>
    %31 = math.exp %30 : vector<16x256xf32>
    %cst_19 = arith.constant 1.000000e+00 : f32
    %32 = vector.broadcast %cst_19 : f32 to vector<16x256xf32>
    %33 = arith.addf %32, %31 : vector<16x256xf32>
    %34 = arith.divf %32, %33 : vector<16x256xf32>
    %35 = arith.mulf %26, %34 : vector<16x256xf32>
    %36 = arith.truncf %35 : vector<16x256xf32> to vector<16x256xbf16>
    %c0_20 = arith.constant 0 : index
    %c0_21 = arith.constant 0 : index
    %37 = vector.load %arg3[%c0_20, %c0_21] : memref<256x256xbf16, #tpu.memory_space<vmem>>, vector<256x256xbf16>
    %cst_22 = arith.constant dense<0.000000e+00> : vector<16x256xf32>
    %38 = tpu.matmul %36, %37, %cst_22 {dimension_numbers = #tpu.dot_dimension_numbers<[1], [0], [0], [1], [0, 0, 1, 1], [], []>} : vector<16x256xbf16>, vector<256x256xbf16>, vector<16x256xf32> -> vector<16x256xf32>
    %c0_23 = arith.constant 0 : index
    %c0_24 = arith.constant 0 : index
    %39 = vector.load %arg6[%c0_23, %c0_24] : memref<1x256xf32, #tpu.memory_space<vmem>>, vector<1x256xf32>
    %40 = vector.broadcast %39 : vector<1x256xf32> to vector<16x256xf32>
    %41 = arith.addf %38, %40 : vector<16x256xf32>
    %c2 = arith.constant 2 : index
    %42 = memref.load %arg8[%c2] : memref<3xf32, #tpu.memory_space<smem>>
    %43 = vector.broadcast %42 : f32 to vector<16x256xf32>
    %44 = arith.mulf %41, %43 : vector<16x256xf32>
    %45 = arith.negf %44 : vector<16x256xf32>
    %46 = math.exp %45 : vector<16x256xf32>
    %cst_25 = arith.constant 1.000000e+00 : f32
    %47 = vector.broadcast %cst_25 : f32 to vector<16x256xf32>
    %48 = arith.addf %47, %46 : vector<16x256xf32>
    %49 = arith.divf %47, %48 : vector<16x256xf32>
    %50 = arith.mulf %41, %49 : vector<16x256xf32>
    %cst_26 = arith.constant 0.000000e+00 : f32
    %51 = vector.broadcast %cst_26 : f32 to vector<1x256xf32>
    %c0_27 = arith.constant 0 : index
    %c0_28 = arith.constant 0 : index
    %52 = vector.load %arg11[%c0_27, %c0_28] : memref<16x768xf32, #tpu.memory_space<vmem>>, vector<1x256xf32>
    tpu.vector_store %arg11[%c0_27, %c0_28], %51 {strides = array<i32>} : memref<16x768xf32, #tpu.memory_space<vmem>>, vector<1x256xf32>,
    %53 = vector.extract_strided_slice %50 {offsets = [0, 0], sizes = [15, 256], strides = [1, 1]} : vector<16x256xf32> to vector<15x256xf32>
    %c1_29 = arith.constant 1 : index
    %c0_30 = arith.constant 0 : index
    %54 = vector.load %arg11[%c1_29, %c0_30] : memref<16x768xf32, #tpu.memory_space<vmem>>, vector<15x256xf32>
    tpu.vector_store %arg11[%c1_29, %c0_30], %53 {strides = array<i32>} : memref<16x768xf32, #tpu.memory_space<vmem>>, vector<15x256xf32>,
    %c0_31 = arith.constant 0 : index
    %c256_32 = arith.constant 256 : index
    %55 = vector.load %arg11[%c0_31, %c256_32] : memref<16x768xf32, #tpu.memory_space<vmem>>, vector<16x256xf32>
    tpu.vector_store %arg11[%c0_31, %c256_32], %50 {strides = array<i32>} : memref<16x768xf32, #tpu.memory_space<vmem>>, vector<16x256xf32>,
    %cst_33 = arith.constant 0.000000e+00 : f32
    %56 = vector.broadcast %cst_33 : f32 to vector<1x256xf32>
    %c15_34 = arith.constant 15 : index
    %c512 = arith.constant 512 : index
    %57 = vector.load %arg11[%c15_34, %c512] : memref<16x768xf32, #tpu.memory_space<vmem>>, vector<1x256xf32>
    tpu.vector_store %arg11[%c15_34, %c512], %56 {strides = array<i32>} : memref<16x768xf32, #tpu.memory_space<vmem>>, vector<1x256xf32>,
    %58 = vector.extract_strided_slice %50 {offsets = [1, 0], sizes = [15, 256], strides = [1, 1]} : vector<16x256xf32> to vector<15x256xf32>
    %c0_35 = arith.constant 0 : index
    %c512_36 = arith.constant 512 : index
    %59 = vector.load %arg11[%c0_35, %c512_36] : memref<16x768xf32, #tpu.memory_space<vmem>>, vector<15x256xf32>
    tpu.vector_store %arg11[%c0_35, %c512_36], %58 {strides = array<i32>} : memref<16x768xf32, #tpu.memory_space<vmem>>, vector<15x256xf32>,
    %c0_37 = arith.constant 0 : index
    %c0_38 = arith.constant 0 : index
    %60 = vector.load %arg11[%c0_37, %c0_38] : memref<16x768xf32, #tpu.memory_space<vmem>>, vector<16x768xf32>
    %61 = arith.truncf %60 : vector<16x768xf32> to vector<16x768xbf16>
    %c0_39 = arith.constant 0 : index
    %c0_40 = arith.constant 0 : index
    %62 = vector.load %arg4[%c0_39, %c0_40] : memref<768x128xbf16, #tpu.memory_space<vmem>>, vector<768x128xbf16>
    %cst_41 = arith.constant dense<0.000000e+00> : vector<16x128xf32>
    %63 = tpu.matmul %61, %62, %cst_41 {dimension_numbers = #tpu.dot_dimension_numbers<[1], [0], [0], [1], [0, 0, 1, 1], [], []>} : vector<16x768xbf16>, vector<768x128xbf16>, vector<16x128xf32> -> vector<16x128xf32>
    %c0_42 = arith.constant 0 : index
    %c0_43 = arith.constant 0 : index
    %64 = vector.load %arg7[%c0_42, %c0_43] : memref<1x128xf32, #tpu.memory_space<vmem>>, vector<1x128xf32>
    %65 = vector.broadcast %64 : vector<1x128xf32> to vector<16x128xf32>
    %66 = arith.addf %63, %65 : vector<16x128xf32>
    %c0_44 = arith.constant 0 : index
    %c0_45 = arith.constant 0 : index
    %c0_46 = arith.constant 0 : index
    %67 = vector.load %arg9[%c0_44, %c0_45, %c0_46] : memref<1x16x128xf32, #tpu.memory_space<vmem>>, vector<1x16x128xf32>
    %68 = vector.shape_cast %67 : vector<1x16x128xf32> to vector<16x128xf32>
    %69 = vector.shape_cast %66 : vector<16x128xf32> to vector<1x16x128xf32>
    tpu.vector_store %arg9[%c0_44, %c0_45, %c0_46], %69 {strides = array<i32>} : memref<1x16x128xf32, #tpu.memory_space<vmem>>, vector<1x16x128xf32>,
    return
  }
  func.func @transform_0(%arg0: i32) -> (i32, i32, i32) {
    %c0_i32 = arith.constant 0 : i32
    %c0_i32_0 = arith.constant 0 : i32
    %c0_i32_1 = arith.constant 0 : i32
    return %arg0, %c0_i32, %c0_i32_0 : i32, i32, i32
  }
  func.func @transform_1(%arg0: i32) -> (i32, i32) {
    %c0_i32 = arith.constant 0 : i32
    %c0_i32_0 = arith.constant 0 : i32
    %c0_i32_1 = arith.constant 0 : i32
    return %c0_i32, %c0_i32_0 : i32, i32
  }
  func.func @transform_2(%arg0: i32) -> (i32, i32) {
    %c0_i32 = arith.constant 0 : i32
    %c0_i32_0 = arith.constant 0 : i32
    %c0_i32_1 = arith.constant 0 : i32
    return %c0_i32, %c0_i32_0 : i32, i32
  }
  func.func @transform_3(%arg0: i32) -> (i32, i32) {
    %c0_i32 = arith.constant 0 : i32
    %c0_i32_0 = arith.constant 0 : i32
    %c0_i32_1 = arith.constant 0 : i32
    return %c0_i32, %c0_i32_0 : i32, i32
  }
  func.func @transform_4(%arg0: i32) -> (i32, i32) {
    %c0_i32 = arith.constant 0 : i32
    %c0_i32_0 = arith.constant 0 : i32
    %c0_i32_1 = arith.constant 0 : i32
    return %c0_i32, %c0_i32_0 : i32, i32
  }
  func.func @transform_5(%arg0: i32) -> (i32, i32) {
    %c0_i32 = arith.constant 0 : i32
    %c0_i32_0 = arith.constant 0 : i32
    %c0_i32_1 = arith.constant 0 : i32
    return %c0_i32, %c0_i32_0 : i32, i32
  }
  func.func @transform_6(%arg0: i32) -> (i32, i32) {
    %c0_i32 = arith.constant 0 : i32
    %c0_i32_0 = arith.constant 0 : i32
    %c0_i32_1 = arith.constant 0 : i32
    return %c0_i32, %c0_i32_0 : i32, i32
  }
  func.func @transform_7(%arg0: i32) -> i32 {
    %c0_i32 = arith.constant 0 : i32
    %c0_i32_0 = arith.constant 0 : i32
    return %c0_i32 : i32
  }
  func.func @transform_8(%arg0: i32) -> (i32, i32, i32) {
    %c0_i32 = arith.constant 0 : i32
    %c0_i32_0 = arith.constant 0 : i32
    %c0_i32_1 = arith.constant 0 : i32
    return %arg0, %c0_i32, %c0_i32_0 : i32, i32, i32
  }
}

</mosaic_0001>

<llo_original>
// kernel: tpu_custom_call.1
$region0: #{tpu_custom_call.1}
  #allocation0 [shape = 'u32[]', space=smem, size = 0x4, offset = 0x4, fixed_abs, tag = 'smem constant byte address 0x4 - core index']
  #allocation1 [shape = 'u32[72,128]{1,0:T(1,128)}', space=vmem, size = 0x9000, scoped, tag = 'internal scratch']
  #allocation2 [shape = 'f32[16,384]{1,0:T(8,128)}', space=vmem, size = 0x6000, scoped, tag = 'scratch operand']
  #allocation3 [shape = 'f32[16,768]{1,0:T(8,128)}', space=vmem, size = 0xc000, scoped, tag = 'scratch operand']
  %s0 = inlined_call_operand.hbm [shape: f32[2,16,128], index: 0, kind: input, shape index: {}]
  %s1 = inlined_call_operand.hbm [shape: bf16[384,256], index: 1, kind: input, shape index: {}]
  %s2 = inlined_call_operand.hbm [shape: bf16[256,256], index: 2, kind: input, shape index: {}]
  %s3 = inlined_call_operand.hbm [shape: bf16[768,128], index: 3, kind: input, shape index: {}]
  %s4 = inlined_call_operand.vmem [shape: f32[1,256], index: 4, kind: input, shape index: {}]
  %s5 = inlined_call_operand.vmem [shape: f32[1,256], index: 5, kind: input, shape index: {}]
  %s6 = inlined_call_operand.vmem [shape: f32[1,128], index: 6, kind: input, shape index: {}]
  %s7 = inlined_call_operand.vmem [shape: f32[3], index: 7, kind: input, shape index: {}]
  %s8 = inlined_call_operand.hbm [shape: f32[2,16,128], index: 8, kind: output, shape index: {}]
  %s9 = sld [smem:[#allocation0]]
  $region85: #{tpu_custom_call.1} parent=0
    _
  %s11 = ssub.s32 1, %s9
  %s12 = scalar_select 0, %s11, %s9
  $region1: #{tpu_custom_call.1} parent=0
    #allocation4 [shape = 'u8[16384]{0}', space=vmem, size = 0x4000, scoped, tag = 'input window, operand 0']
    #allocation5 [shape = 's32[2]{0}', space=sflag, size = 0x8, scoped, tag = 'scoped memory for tpu_custom_call.1']
    #allocation6 [shape = 's32[2]{0}', space=sflag, size = 0x8, scoped, tag = 'scoped memory for tpu_custom_call.1']
    #allocation7 [shape = 's32[2]{0}', space=sflag, size = 0x8, scoped, tag = 'scoped memory for tpu_custom_call.1']
    #allocation8 [shape = 'u8[196608]{0}', space=vmem, size = 0x30000, scoped, tag = 'input window, operand 1, single buffered']
    #allocation9 [shape = 's32[1]{0}', space=sflag, size = 0x4, scoped, tag = 'scoped memory for tpu_custom_call.1']
    #allocation10 [shape = 'u8[131072]{0}', space=vmem, size = 0x20000, scoped, tag = 'input window, operand 2, single buffered']
    #allocation11 [shape = 'u8[196608]{0}', space=vmem, size = 0x30000, scoped, tag = 'input window, operand 3, single buffered']
    #allocation12 [shape = 's32[1]{0}', space=sflag, size = 0x4, scoped, tag = 'scoped memory for tpu_custom_call.1']
    #allocation13 [shape = 'u8[512]{0}', space=smem, size = 0x200, scoped, tag = 'input window, operand 7, single buffered']
    #allocation14 [shape = 'u8[16384]{0}', space=vmem, size = 0x4000, scoped, tag = 'output window, operand 0']
    %13 = vsyncpa [#allocation5], 0
    %s14 = scalar_lea.sflag [#allocation5], 1
    %15 = vsyncpa %s14, 0
    %16 = vsyncpa [#allocation9], 0
    %17 = vsyncpa [#allocation12], 0
    %18 = vsyncpa [#allocation7], 0
    %19 = vsyncpa [#allocation6], 0
    %s20 = scalar_lea.sflag [#allocation6], 1
    %21 = vsyncpa %s20, 0
    loop: start=0, step=1, limit=4
    $region2: #{tpu_custom_call.1} parent=1 // loop_pre_header
      _
    $region3: #{tpu_custom_call.1} parent=1 // loop_header
      %s23 = sphi 0, %s27
      %p24 = scmp.ge.s32.totalorder %s23, 4
      %s33 = sphi 0, %s35
      %s36 = sphi 0, %s33
      %s37 = sphi 0, %s36
      %s53 = sphi 0, %s37
      %s57 = sphi 0, %s57
      %s59 = sphi 0, %s57
      %s60 = sphi 0, %s59
      %s74 = sphi 0, %s60
      %s78 = sphi 0, %s78
      %s80 = sphi 0, %s78
      %s81 = sphi 0, %s80
      %s95 = sphi 0, %s81
      %s99 = sphi 0, %s99
      %s101 = sphi 0, %s99
      %s102 = sphi 0, %s101
      %s116 = sphi 0, %s102
      %s120 = sphi 0, %s120
      %s122 = sphi 0, %s120
      %s123 = sphi 0, %s122
      %s137 = sphi 0, %s123
      %s141 = sphi 0, %s141
      %s143 = sphi 0, %s141
      %s144 = sphi 0, %s143
      %s158 = sphi 0, %s144
      %s162 = sphi 0, %s162
      %s164 = sphi 0, %s162
      %s165 = sphi 0, %s164
      %s179 = sphi 0, %s165
      %s183 = sphi 0, %s183
      %s185 = sphi 0, %s183
      %s186 = sphi 0, %s185
      %s200 = sphi 0, %s186
      %s206 = sphi 0, %s208
      %s209 = sphi 0, %s206
      %s210 = sphi 0, %s209
      %s226 = sphi 0, %s210
    $region4: #{tpu_custom_call.1} parent=1 // loop_header_branch
      %26 = sbr.rel (%p24) target = $region8
    $region5: #{tpu_custom_call.1} parent=1 // loop_body
      %s28 = ssub.s32 %s23, 1
      %s29 = ssub.s32 %s23, 2
      %s30 = sadd.s32 %s23, 1
      %s31 = ssub.s32 %s23, %s30
      %p32 = scmp.eq.s32.totalorder %s31, 0
      %s34 = sadd.s32 %s33, 1
      %s35 = scalar_select %p32, %s33, %s34
      %p38 = pneg %p32
      %p39 = scmp.eq.s32.totalorder %s23, 1
      %p40 = por %p38, %p39
      %p41 = scmp.ne.s32.totalorder %s33, %s36
      %p42 = scmp.eq.s32.totalorder %s23, 0
      %p43 = por %p41, %p42
      %p44 = scmp.ne.s32.totalorder %s33, %s36
      %p45 = scmp.eq.s32.totalorder %s28, 1
      %p46 = por %p44, %p45
      %p47 = scmp.ne.s32.totalorder %s36, %s37
      %p48 = scmp.eq.s32.totalorder %s28, 0
      %p49 = por %p47, %p48
      %p50 = scmp.ne.s32.totalorder %s36, %s37
      %p51 = scmp.eq.s32.totalorder %s29, 1
      %p52 = por %p50, %p51
      %p54 = scmp.ne.s32.totalorder %s37, %s53
      %p55 = scmp.eq.s32.totalorder %s29, 0
      %p56 = por %p54, %p55
      %s58 = sadd.s32 %s57, 1
      %p61 = scmp.eq.s32.totalorder %s23, 1
      %p62 = scmp.ne.s32.totalorder %s57, %s59
      %p63 = scmp.eq.s32.totalorder %s23, 0
      %p64 = por %p62, %p63
      %p65 = scmp.ne.s32.totalorder %s57, %s59
      %p66 = scmp.eq.s32.totalorder %s28, 1
      %p67 = por %p65, %p66
      %p68 = scmp.ne.s32.totalorder %s59, %s60
      %p69 = scmp.eq.s32.totalorder %s28, 0
      %p70 = por %p68, %p69
      %p71 = scmp.ne.s32.totalorder %s59, %s60
      %p72 = scmp.eq.s32.totalorder %s29, 1
      %p73 = por %p71, %p72
      %p75 = scmp.ne.s32.totalorder %s60, %s74
      %p76 = scmp.eq.s32.totalorder %s29, 0
      %p77 = por %p75, %p76
      %s79 = sadd.s32 %s78, 1
      %p82 = scmp.eq.s32.totalorder %s23, 1
      %p83 = scmp.ne.s32.totalorder %s78, %s80
      %p84 = scmp.eq.s32.totalorder %s23, 0
      %p85 = por %p83, %p84
      %p86 = scmp.ne.s32.totalorder %s78, %s80
      %p87 = scmp.eq.s32.totalorder %s28, 1
      %p88 = por %p86, %p87
      %p89 = scmp.ne.s32.totalorder %s80, %s81
      %p90 = scmp.eq.s32.totalorder %s28, 0
      %p91 = por %p89, %p90
      %p92 = scmp.ne.s32.totalorder %s80, %s81
      %p93 = scmp.eq.s32.totalorder %s29, 1
      %p94 = por %p92, %p93
      %p96 = scmp.ne.s32.totalorder %s81, %s95
      %p97 = scmp.eq.s32.totalorder %s29, 0
      %p98 = por %p96, %p97
      %s100 = sadd.s32 %s99, 1
      %p103 = scmp.eq.s32.totalorder %s23, 1
      %p104 = scmp.ne.s32.totalorder %s99, %s101
      %p105 = scmp.eq.s32.totalorder %s23, 0
      %p106 = por %p104, %p105
      %p107 = scmp.ne.s32.totalorder %s99, %s101
      %p108 = scmp.eq.s32.totalorder %s28, 1
      %p109 = por %p107, %p108
      %p110 = scmp.ne.s32.totalorder %s101, %s102
      %p111 = scmp.eq.s32.totalorder %s28, 0
      %p112 = por %p110, %p111
      %p113 = scmp.ne.s32.totalorder %s101, %s102
      %p114 = scmp.eq.s32.totalorder %s29, 1
      %p115 = por %p113, %p114
      %p117 = scmp.ne.s32.totalorder %s102, %s116
      %p118 = scmp.eq.s32.totalorder %s29, 0
      %p119 = por %p117, %p118
      %s121 = sadd.s32 %s120, 1
      %p124 = scmp.eq.s32.totalorder %s23, 1
      %p125 = scmp.ne.s32.totalorder %s120, %s122
      %p126 = scmp.eq.s32.totalorder %s23, 0
      %p127 = por %p125, %p126
      %p128 = scmp.ne.s32.totalorder %s120, %s122
      %p129 = scmp.eq.s32.totalorder %s28, 1
      %p130 = por %p128, %p129
      %p131 = scmp.ne.s32.totalorder %s122, %s123
      %p132 = scmp.eq.s32.totalorder %s28, 0
      %p133 = por %p131, %p132
      %p134 = scmp.ne.s32.totalorder %s122, %s123
      %p135 = scmp.eq.s32.totalorder %s29, 1
      %p136 = por %p134, %p135
      %p138 = scmp.ne.s32.totalorder %s123, %s137
      %p139 = scmp.eq.s32.totalorder %s29, 0
      %p140 = por %p138, %p139
      %s142 = sadd.s32 %s141, 1
      %p145 = scmp.eq.s32.totalorder %s23, 1
      %p146 = scmp.ne.s32.totalorder %s141, %s143
      %p147 = scmp.eq.s32.totalorder %s23, 0
      %p148 = por %p146, %p147
      %p149 = scmp.ne.s32.totalorder %s141, %s143
      %p150 = scmp.eq.s32.totalorder %s28, 1
      %p151 = por %p149, %p150
      %p152 = scmp.ne.s32.totalorder %s143, %s144
      %p153 = scmp.eq.s32.totalorder %s28, 0
      %p154 = por %p152, %p153
      %p155 = scmp.ne.s32.totalorder %s143, %s144
      %p156 = scmp.eq.s32.totalorder %s29, 1
      %p157 = por %p155, %p156
      %p159 = scmp.ne.s32.totalorder %s144, %s158
      %p160 = scmp.eq.s32.totalorder %s29, 0
      %p161 = por %p159, %p160
      %s163 = sadd.s32 %s162, 1
      %p166 = scmp.eq.s32.totalorder %s23, 1
      %p167 = scmp.ne.s32.totalorder %s162, %s164
      %p168 = scmp.eq.s32.totalorder %s23, 0
      %p169 = por %p167, %p168
      %p170 = scmp.ne.s32.totalorder %s162, %s164
      %p171 = scmp.eq.s32.totalorder %s28, 1
      %p172 = por %p170, %p171
      %p173 = scmp.ne.s32.totalorder %s164, %s165
      %p174 = scmp.eq.s32.totalorder %s28, 0
      %p175 = por %p173, %p174
      %p176 = scmp.ne.s32.totalorder %s164, %s165
      %p177 = scmp.eq.s32.totalorder %s29, 1
      %p178 = por %p176, %p177
      %p180 = scmp.ne.s32.totalorder %s165, %s179
      %p181 = scmp.eq.s32.totalorder %s29, 0
      %p182 = por %p180, %p181
      %s184 = sadd.s32 %s183, 1
      %p187 = scmp.eq.s32.totalorder %s23, 1
      %p188 = scmp.ne.s32.totalorder %s183, %s185
      %p189 = scmp.eq.s32.totalorder %s23, 0
      %p190 = por %p188, %p189
      %p191 = scmp.ne.s32.totalorder %s183, %s185
      %p192 = scmp.eq.s32.totalorder %s28, 1
      %p193 = por %p191, %p192
      %p194 = scmp.ne.s32.totalorder %s185, %s186
      %p195 = scmp.eq.s32.totalorder %s28, 0
      %p196 = por %p194, %p195
      %p197 = scmp.ne.s32.totalorder %s185, %s186
      %p198 = scmp.eq.s32.totalorder %s29, 1
      %p199 = por %p197, %p198
      %p201 = scmp.ne.s32.totalorder %s186, %s200
      %p202 = scmp.eq.s32.totalorder %s29, 0
      %p203 = por %p201, %p202
      %s204 = ssub.s32 %s23, %s30
      %p205 = scmp.eq.s32.totalorder %s204, 0
      %s207 = sadd.s32 %s206, 1
      %s208 = scalar_select %p205, %s206, %s207
      %p211 = pneg %p205
      %p212 = scmp.eq.s32.totalorder %s23, 1
      %p213 = por %p211, %p212
      %p214 = scmp.ne.s32.totalorder %s206, %s209
      %p215 = scmp.eq.s32.totalorder %s23, 0
      %p216 = por %p214, %p215
      %p217 = scmp.ne.s32.totalorder %s206, %s209
      %p218 = scmp.eq.s32.totalorder %s28, 1
      %p219 = por %p217, %p218
      %p220 = scmp.ne.s32.totalorder %s209, %s210
      %p221 = scmp.eq.s32.totalorder %s28, 0
      %p222 = por %p220, %p221
      %p223 = scmp.ne.s32.totalorder %s209, %s210
      %p224 = scmp.eq.s32.totalorder %s29, 1
      %p225 = por %p223, %p224
      %p227 = scmp.ne.s32.totalorder %s210, %s226
      %p228 = scmp.eq.s32.totalorder %s29, 0
      %p229 = por %p227, %p228
      %p230 = scmp.le.s32.totalorder 1, %s23
      %p231 = scmp.lt.s32.totalorder %s23, 3
      %p232 = pnand %p230, %p231
      %p233 = pneg %p232
      // Predicated region
      $region9: #{tpu_custom_call.1} parent=5 // pred_check
        _
      $region10: #{tpu_custom_call.1} parent=5 // pred_check_branch
        %235 = sbr.rel (%p232) target = $region12
      $region11: #{tpu_custom_call.1} parent=5 // pred_region
        %s236 = ssub.s32 %s23, 1
        // Predicated region
        $region13: #{tpu_custom_call.1} parent=11 // pred_check
          %p237 = pneg %p70
        $region14: #{tpu_custom_call.1} parent=11 // pred_check_branch
          %239 = sbr.rel (%p237) target = $region16
        $region15: #{tpu_custom_call.1} parent=11 // pred_region
          %241 = vsyncadd [#allocation9], 0
          %s242 = sshll.u32 %s1, 4
          %s243 = int_to_ptr.hbm [resolvable:$true] %s242
          %s244 = sshll.u32 [#allocation8], 4
          %s245 = int_to_ptr.vmem [resolvable:$true] %s244
          %250 = dma.hbm_to_vmem [thread:$0]  %s243, 6144, %s245, [#allocation9], 128, 128, 8
        $region16: #{tpu_custom_call.1} parent=11 // pred_fallthru
          _
        // Predicated region
        $region17: #{tpu_custom_call.1} parent=11 // pred_check
          %p251 = pneg %p91
        $region18: #{tpu_custom_call.1} parent=11 // pred_check_branch
          %253 = sbr.rel (%p251) target = $region20
        $region19: #{tpu_custom_call.1} parent=11 // pred_region
          %255 = vsyncadd [#allocation9], 0
          %s256 = sshll.u32 %s2, 4
          %s257 = int_to_ptr.hbm [resolvable:$true] %s256
          %s258 = sshll.u32 [#allocation10], 4
          %s259 = int_to_ptr.vmem [resolvable:$true] %s258
          %264 = dma.hbm_to_vmem [thread:$0]  %s257, 4096, %s259, [#allocation9], 128, 128, 8
        $region20: #{tpu_custom_call.1} parent=11 // pred_fallthru
          _
        // Predicated region
        $region21: #{tpu_custom_call.1} parent=11 // pred_check
          %p265 = pneg %p112
        $region22: #{tpu_custom_call.1} parent=11 // pred_check_branch
          %267 = sbr.rel (%p265) target = $region24
        $region23: #{tpu_custom_call.1} parent=11 // pred_region
          %269 = vsyncadd [#allocation12], 0
          %s270 = sshll.u32 %s3, 4
          %s271 = int_to_ptr.hbm [resolvable:$true] %s270
          %s272 = sshll.u32 [#allocation11], 4
          %s273 = int_to_ptr.vmem [resolvable:$true] %s272
          %278 = dma.hbm_to_vmem [thread:$0]  %s271, 6144, %s273, [#allocation12], 64, 64, 4
        $region24: #{tpu_custom_call.1} parent=11 // pred_fallthru
          _
        // Predicated region
        $region25: #{tpu_custom_call.1} parent=11 // pred_check
          %p279 = pneg %p133
        $region26: #{tpu_custom_call.1} parent=11 // pred_check_branch
          %281 = sbr.rel (%p279) target = $region28
        $region27: #{tpu_custom_call.1} parent=11 // pred_region
          _
        $region28: #{tpu_custom_call.1} parent=11 // pred_fallthru
          _
        // Predicated region
        $region29: #{tpu_custom_call.1} parent=11 // pred_check
          %p282 = pneg %p154
        $region30: #{tpu_custom_call.1} parent=11 // pred_check_branch
          %284 = sbr.rel (%p282) target = $region32
        $region31: #{tpu_custom_call.1} parent=11 // pred_region
          _
        $region32: #{tpu_custom_call.1} parent=11 // pred_fallthru
          _
        // Predicated region
        $region33: #{tpu_custom_call.1} parent=11 // pred_check
          %p285 = pneg %p175
        $region34: #{tpu_custom_call.1} parent=11 // pred_check_branch
          %287 = sbr.rel (%p285) target = $region36
        $region35: #{tpu_custom_call.1} parent=11 // pred_region
          _
        $region36: #{tpu_custom_call.1} parent=11 // pred_fallthru
          _
        // Predicated region
        $region37: #{tpu_custom_call.1} parent=11 // pred_check
          %p288 = pneg %p196
        $region38: #{tpu_custom_call.1} parent=11 // pred_check_branch
          %290 = sbr.rel (%p288) target = $region40
        $region39: #{tpu_custom_call.1} parent=11 // pred_region
          %292 = vsyncadd [#allocation7], 0
          %s294 = sshll.u32 %s7, 4
          %s295 = int_to_ptr.vmem [resolvable:$true] %s294
          %297 = dma.vmem_to_smem %s295, 16, [#allocation13], [#allocation7]
        $region40: #{tpu_custom_call.1} parent=11 // pred_fallthru
          _
      $region12: #{tpu_custom_call.1} parent=5 // pred_fallthru
        _
      %p298 = scmp.lt.s32.totalorder %s23, 2
      // Predicated region
      $region41: #{tpu_custom_call.1} parent=5 // pred_check
        %p299 = pneg %p298
      $region42: #{tpu_custom_call.1} parent=5 // pred_check_branch
        %301 = sbr.rel (%p299) target = $region44
      $region43: #{tpu_custom_call.1} parent=5 // pred_region
        // Predicated region
        $region45: #{tpu_custom_call.1} parent=43 // pred_check
          %p302 = pneg %p43
        $region46: #{tpu_custom_call.1} parent=43 // pred_check_branch
          %304 = sbr.rel (%p302) target = $region48
        $region47: #{tpu_custom_call.1} parent=43 // pred_region
          %s305 = sand.u32 %s33, 1
          %s306 = scalar_lea.sflag [#allocation5], %s305
          %s307 = sand.u32 %s33, 1
          %s308 = smul.addr %s307, 16
          %s309 = scalar_lea.vmem [#allocation4], %s308
          %311 = vsyncadd %s306, 0
          %s312 = smul.addr %s23, 2
          %s313 = smul.addr %s312, 8
          %s314 = scalar_lea.hbm %s0, %s313
          %s315 = sshll.u32 %s314, 4
          %s316 = int_to_ptr.hbm [resolvable:$true] %s315
          %s317 = sshll.u32 %s309, 4
          %s318 = int_to_ptr.vmem [resolvable:$true] %s317
          %323 = dma.hbm_to_vmem [thread:$0]  %s316, 256, %s318, %s306, 128, 128, 8
        $region48: #{tpu_custom_call.1} parent=43 // pred_fallthru
          _
      $region44: #{tpu_custom_call.1} parent=5 // pred_fallthru
        _
      %p324 = scmp.le.s32.totalorder 1, %s23
      %p325 = scmp.lt.s32.totalorder %s23, 3
      %p326 = pnand %p324, %p325
      %p327 = pneg %p326
      // Predicated region
      $region49: #{tpu_custom_call.1} parent=5 // pred_check
        _
      $region50: #{tpu_custom_call.1} parent=5 // pred_check_branch
        %329 = sbr.rel (%p326) target = $region52
      $region51: #{tpu_custom_call.1} parent=5 // pred_region
        %s330 = ssub.s32 %s23, 1
        %s331 = sand.u32 %s36, 1
        %s332 = scalar_lea.sflag [#allocation5], %s331
        %s333 = sand.u32 %s36, 1
        %s334 = smul.addr %s333, 16
        %s335 = scalar_lea.vmem [#allocation4], %s334
        // Predicated region
        $region53: #{tpu_custom_call.1} parent=51 // pred_check
          %p336 = pneg %p49
        $region54: #{tpu_custom_call.1} parent=51 // pred_check_branch
          %338 = sbr.rel (%p336) target = $region56
        $region55: #{tpu_custom_call.1} parent=51 // pred_region
          %340 = dma.done %s332, 256
        $region56: #{tpu_custom_call.1} parent=51 // pred_fallthru
          _
        // Predicated region
        $region57: #{tpu_custom_call.1} parent=51 // pred_check
          %p341 = pneg %p70
        $region58: #{tpu_custom_call.1} parent=51 // pred_check_branch
          %343 = sbr.rel (%p341) target = $region60
        $region59: #{tpu_custom_call.1} parent=51 // pred_region
          %345 = dma.done [#allocation9], 6144
        $region60: #{tpu_custom_call.1} parent=51 // pred_fallthru
          _
        // Predicated region
        $region61: #{tpu_custom_call.1} parent=51 // pred_check
          %p346 = pneg %p91
        $region62: #{tpu_custom_call.1} parent=51 // pred_check_branch
          %348 = sbr.rel (%p346) target = $region64
        $region63: #{tpu_custom_call.1} parent=51 // pred_region
          %350 = dma.done [#allocation9], 4096
        $region64: #{tpu_custom_call.1} parent=51 // pred_fallthru
          _
        // Predicated region
        $region65: #{tpu_custom_call.1} parent=51 // pred_check
          %p351 = pneg %p112
        $region66: #{tpu_custom_call.1} parent=51 // pred_check_branch
          %353 = sbr.rel (%p351) target = $region68
        $region67: #{tpu_custom_call.1} parent=51 // pred_region
          %355 = dma.done [#allocation12], 6144
        $region68: #{tpu_custom_call.1} parent=51 // pred_fallthru
          _
        // Predicated region
        $region69: #{tpu_custom_call.1} parent=51 // pred_check
          %p356 = pneg %p196
        $region70: #{tpu_custom_call.1} parent=51 // pred_check_branch
          %358 = sbr.rel (%p356) target = $region72
        $region71: #{tpu_custom_call.1} parent=51 // pred_region
          %360 = dma.done [#allocation7], 16
        $region72: #{tpu_custom_call.1} parent=51 // pred_fallthru
          _
        %361 = sfence
        %s362 = sand.u32 %s36, 1
        %s363 = scalar_lea.sflag [#allocation5], %s362
        %s364 = sand.u32 %s36, 1
        %s365 = smul.addr %s364, 16
        %s366 = scalar_lea.vmem [#allocation4], %s365
        %p367 = pneg %p49
        %p368 = pneg %p46
        %p369 = pneg %p70
        %p370 = pneg %p67
        %p371 = pneg %p91
        %p372 = pneg %p88
        %p373 = pneg %p112
        %p374 = pneg %p109
        %p375 = pneg %p133
        %p376 = pneg %p130
        %p377 = pneg %p154
        %p378 = pneg %p151
        %p379 = pneg %p175
        %p380 = pneg %p172
        %p381 = pneg %p196
        %p382 = pneg %p193
        %p383 = pneg %p222
        %p384 = pneg %p219
        %s385 = sand.u32 %s209, 1
        %s386 = scalar_lea.sflag [#allocation6], %s385
        %s387 = sand.u32 %s209, 1
        %s388 = smul.addr %s387, 16
        %s389 = scalar_lea.vmem [#allocation14], %s388
        %v390 = vld [vmem:[%s335] sm:$0xff]
        %v391 = vld [vmem:[%s335 + $0x8] sm:$0xff]
        %s392 = sld [smem:[#allocation13]]
        %v393 = vstv %s392
        %v394 = vmul.f32 %v390, %v393
        %v395 = vmul.f32 %v391, %v393
        %v396 = vxor.u32 %v394, 2147483648
        %v397 = vxor.u32 %v395, 2147483648
        %v398 = vmul.f32 %v396, 1.442695
        %v399 = vpow.pop %v398
        %v400 = vmul.f32 %v397, 1.442695
        %v401 = vpow.pop %v400
        %v402 = vadd.f32 %v399, 1.0
        %v403 = vadd.f32 %v401, 1.0
        %v404 = vrcp.pop %v402
        %v405 = vmul.f32 %v402, %v404
        %v406 = vsub.f32 1.0, %v405
        %v407 = vmul.f32 %v404, %v406
        %v408 = vadd.f32 %v404, %v407
        %vm409 = vweird.f32 %v402
        %vm410 = vweird.f32 %v404
        %vm411 = vmor %vm409, %vm410
        %v412 = vsel %vm411, %v404, %v408
        %v413 = vand.u32 2147483647, %v402
        %vm414 = vcmp.eq.f32.partialorder %v413, 8.507059e+37
        %v415 = vand.u32 %v402, 2147483648
        %v416 = vor.u32 1.1754944e-38, %v415
        %v417 = vsel %vm414, %v416, %v412
        %v418 = vmul.f32 1.0, %v417
        %v419 = vrcp.pop %v403
        %v420 = vmul.f32 %v403, %v419
        %v421 = vsub.f32 1.0, %v420
        %v422 = vmul.f32 %v419, %v421
        %v423 = vadd.f32 %v419, %v422
        %vm424 = vweird.f32 %v403
        %vm425 = vweird.f32 %v419
        %vm426 = vmor %vm424, %vm425
        %v427 = vsel %vm426, %v419, %v423
        %v428 = vand.u32 2147483647, %v403
        %vm429 = vcmp.eq.f32.partialorder %v428, 8.507059e+37
        %v430 = vand.u32 %v403, 2147483648
        %v431 = vor.u32 1.1754944e-38, %v430
        %v432 = vsel %vm429, %v431, %v427
        %v433 = vmul.f32 1.0, %v432
        %v434 = vmul.f32 %v390, %v418
        %v435 = vmul.f32 %v391, %v433
        %436 = vst [vmem:[#allocation2] sm:$0x1] 0.0
        %vm439 = vcmask 1040384
        %v440 = vrot.slane %v434, 7
        %v441 = vrot.slane %v435, 7
        %v442 = vsel %vm439, %v440, %v441
        %445 = vst [vmem:[#allocation2] sm:$0xfe] %v440
        %446 = vst [vmem:[#allocation2 + $0x18] sm:$0xff] %v442
        %447 = vst [vmem:[#allocation2 + $0x8] sm:$0xff] %v434
        %448 = vst [vmem:[#allocation2 + $0x20] sm:$0xff] %v435
        %449 = vst [vmem:[#allocation2 + $0x2f] sm:$0x1] 0.0
        %vm450 = vcmask 1046528
        %v451 = vrot.slane %v434, 1
        %v452 = vrot.slane %v435, 1
        %v453 = vsel %vm450, %v451, %v452
        %456 = vst [vmem:[#allocation2 + $0x10] sm:$0xff] %v453
        %457 = vst [vmem:[#allocation2 + $0x28] sm:$0x7f] %v452
        %v458 = vld [vmem:[#allocation2] sm:$0xff]
        %v459 = vld [vmem:[#allocation2 + $0x8] sm:$0xff]
        %v460 = vld [vmem:[#allocation2 + $0x10] sm:$0xff]
        %v461 = vld [vmem:[#allocation2 + $0x18] sm:$0xff]
        %v462 = vld [vmem:[#allocation2 + $0x20] sm:$0xff]
        %v463 = vld [vmem:[#allocation2 + $0x28] sm:$0xff]
        %v464 = vpack.c.bf16 %v461, %v458
        %v465 = vpack.c.bf16 %v462, %v459
        %v466 = vpack.c.bf16 %v463, %v460
        %v467 = vld [vmem:[#allocation8] sm:$0xff]
        %v468 = vld [vmem:[#allocation8 + $0x8] sm:$0xff]
        %v469 = vld [vmem:[#allocation8 + $0x10] sm:$0xff]
        %v470 = vld [vmem:[#allocation8 + $0x18] sm:$0xff]
        %v471 = vld [vmem:[#allocation8 + $0x20] sm:$0xff]
        %v472 = vld [vmem:[#allocation8 + $0x28] sm:$0xff]
        %v473 = vld [vmem:[#allocation8 + $0x30] sm:$0xff]
        %v474 = vld [vmem:[#allocation8 + $0x38] sm:$0xff]
        %v475 = vld [vmem:[#allocation8 + $0x40] sm:$0xff]
        %v476 = vld [vmem:[#allocation8 + $0x48] sm:$0xff]
        %v477 = vld [vmem:[#allocation8 + $0x50] sm:$0xff]
        %v478 = vld [vmem:[#allocation8 + $0x58] sm:$0xff]
        %v479 = vld [vmem:[#allocation8 + $0x60] sm:$0xff]
        %v480 = vld [vmem:[#allocation8 + $0x68] sm:$0xff]
        %v481 = vld [vmem:[#allocation8 + $0x70] sm:$0xff]
        %v482 = vld [vmem:[#allocation8 + $0x78] sm:$0xff]
        %v483 = vld [vmem:[#allocation8 + $0x80] sm:$0xff]
        %v484 = vld [vmem:[#allocation8 + $0x88] sm:$0xff]
        %v485 = vld [vmem:[#allocation8 + $0x90] sm:$0xff]
        %v486 = vld [vmem:[#allocation8 + $0x98] sm:$0xff]
        %v487 = vld [vmem:[#allocation8 + $0xa0] sm:$0xff]
        %v488 = vld [vmem:[#allocation8 + $0xa8] sm:$0xff]
        %v489 = vld [vmem:[#allocation8 + $0xb0] sm:$0xff]
        %v490 = vld [vmem:[#allocation8 + $0xb8] sm:$0xff]
        %v491 = vld [vmem:[#allocation8 + $0xc0] sm:$0xff]
        %v492 = vld [vmem:[#allocation8 + $0xc8] sm:$0xff]
        %v493 = vld [vmem:[#allocation8 + $0xd0] sm:$0xff]
        %v494 = vld [vmem:[#allocation8 + $0xd8] sm:$0xff]
        %v495 = vld [vmem:[#allocation8 + $0xe0] sm:$0xff]
        %v496 = vld [vmem:[#allocation8 + $0xe8] sm:$0xff]
        %v497 = vld [vmem:[#allocation8 + $0xf0] sm:$0xff]
        %v498 = vld [vmem:[#allocation8 + $0xf8] sm:$0xff]
        %v499 = vld [vmem:[#allocation8 + $0x100] sm:$0xff]
        %v500 = vld [vmem:[#allocation8 + $0x108] sm:$0xff]
        %v501 = vld [vmem:[#allocation8 + $0x110] sm:$0xff]
        %v502 = vld [vmem:[#allocation8 + $0x118] sm:$0xff]
        %v503 = vld [vmem:[#allocation8 + $0x120] sm:$0xff]
        %v504 = vld [vmem:[#allocation8 + $0x128] sm:$0xff]
        %v505 = vld [vmem:[#allocation8 + $0x130] sm:$0xff]
        %v506 = vld [vmem:[#allocation8 + $0x138] sm:$0xff]
        %v507 = vld [vmem:[#allocation8 + $0x140] sm:$0xff]
        %v508 = vld [vmem:[#allocation8 + $0x148] sm:$0xff]
        %v509 = vld [vmem:[#allocation8 + $0x150] sm:$0xff]
        %v510 = vld [vmem:[#allocation8 + $0x158] sm:$0xff]
        %v511 = vld [vmem:[#allocation8 + $0x160] sm:$0xff]
        %v512 = vld [vmem:[#allocation8 + $0x168] sm:$0xff]
        %v513 = vld [vmem:[#allocation8 + $0x170] sm:$0xff]
        %v514 = vld [vmem:[#allocation8 + $0x178] sm:$0xff]
        %v515 = vld [vmem:[%s4] sm:$0x3]
        %v517 = vperm.slane %v515, 0
        %v518 = vperm.slane %v515, 1
        %v569 = vunpack.c.l.b16 %v467
        %v570 = vunpack.c.h.b16 %v467
        %v571 = vunpack.c.l.b16 %v468
        %v572 = vunpack.c.h.b16 %v468
        %v573 = vunpack.c.l.b16 %v469
        %v574 = vunpack.c.h.b16 %v469
        %v575 = vunpack.c.l.b16 %v470
        %v576 = vunpack.c.h.b16 %v470
        %v577 = vunpack.c.l.b16 %v471
        %v578 = vunpack.c.h.b16 %v471
        %v579 = vunpack.c.l.b16 %v472
        %v580 = vunpack.c.h.b16 %v472
        %v581 = vunpack.c.l.b16 %v473
        %v582 = vunpack.c.h.b16 %v473
        %v583 = vunpack.c.l.b16 %v474
        %v584 = vunpack.c.h.b16 %v474
        %v585 = vunpack.c.l.b16 %v475
        %v586 = vunpack.c.h.b16 %v475
        %v587 = vunpack.c.l.b16 %v476
        %v588 = vunpack.c.h.b16 %v476
        %v589 = vunpack.c.l.b16 %v477
        %v590 = vunpack.c.h.b16 %v477
        %v591 = vunpack.c.l.b16 %v478
        %v592 = vunpack.c.h.b16 %v478
        %v593 = vunpack.c.l.b16 %v479
        %v594 = vunpack.c.h.b16 %v479
        %v595 = vunpack.c.l.b16 %v480
        %v596 = vunpack.c.h.b16 %v480
        %v597 = vunpack.c.l.b16 %v481
        %v598 = vunpack.c.h.b16 %v481
        %v599 = vunpack.c.l.b16 %v482
        %v600 = vunpack.c.h.b16 %v482
        %v601 = vunpack.c.l.b16 %v483
        %v602 = vunpack.c.h.b16 %v483
        %v603 = vunpack.c.l.b16 %v484
        %v604 = vunpack.c.h.b16 %v484
        %v605 = vunpack.c.l.b16 %v485
        %v606 = vunpack.c.h.b16 %v485
        %v607 = vunpack.c.l.b16 %v486
        %v608 = vunpack.c.h.b16 %v486
        %v609 = vunpack.c.l.b16 %v487
        %v610 = vunpack.c.h.b16 %v487
        %v611 = vunpack.c.l.b16 %v488
        %v612 = vunpack.c.h.b16 %v488
        %v613 = vunpack.c.l.b16 %v489
        %v614 = vunpack.c.h.b16 %v489
        %v615 = vunpack.c.l.b16 %v490
        %v616 = vunpack.c.h.b16 %v490
        %v617 = vunpack.c.l.b16 %v491
        %v618 = vunpack.c.h.b16 %v491
        %v619 = vunpack.c.l.b16 %v492
        %v620 = vunpack.c.h.b16 %v492
        %v621 = vunpack.c.l.b16 %v493
        %v622 = vunpack.c.h.b16 %v493
        %v623 = vunpack.c.l.b16 %v494
        %v624 = vunpack.c.h.b16 %v494
        %v625 = vunpack.c.l.b16 %v495
        %v626 = vunpack.c.h.b16 %v495
        %v627 = vunpack.c.l.b16 %v496
        %v628 = vunpack.c.h.b16 %v496
        %v629 = vunpack.c.l.b16 %v497
        %v630 = vunpack.c.h.b16 %v497
        %v631 = vunpack.c.l.b16 %v498
        %v632 = vunpack.c.h.b16 %v498
        %v633 = vunpack.c.l.b16 %v499
        %v634 = vunpack.c.h.b16 %v499
        %v635 = vunpack.c.l.b16 %v500
        %v636 = vunpack.c.h.b16 %v500
        %v637 = vunpack.c.l.b16 %v501
        %v638 = vunpack.c.h.b16 %v501
        %v639 = vunpack.c.l.b16 %v502
        %v640 = vunpack.c.h.b16 %v502
        %v641 = vunpack.c.l.b16 %v503
        %v642 = vunpack.c.h.b16 %v503
        %v643 = vunpack.c.l.b16 %v504
        %v644 = vunpack.c.h.b16 %v504
        %v645 = vunpack.c.l.b16 %v505
        %v646 = vunpack.c.h.b16 %v505
        %v647 = vunpack.c.l.b16 %v506
        %v648 = vunpack.c.h.b16 %v506
        %v649 = vunpack.c.l.b16 %v507
        %v650 = vunpack.c.h.b16 %v507
        %v651 = vunpack.c.l.b16 %v508
        %v652 = vunpack.c.h.b16 %v508
        %v653 = vunpack.c.l.b16 %v509
        %v654 = vunpack.c.h.b16 %v509
        %v655 = vunpack.c.l.b16 %v510
        %v656 = vunpack.c.h.b16 %v510
        %v657 = vunpack.c.l.b16 %v511
        %v658 = vunpack.c.h.b16 %v511
        %v659 = vunpack.c.l.b16 %v512
        %v660 = vunpack.c.h.b16 %v512
        %v661 = vunpack.c.l.b16 %v513
        %v662 = vunpack.c.h.b16 %v513
        %v663 = vunpack.c.l.b16 %v514
        %v664 = vunpack.c.h.b16 %v514
        %v665 = vpack.c.b16 %v571, %v569
        %v666 = vpack.c.b16 %v572, %v570
        %v667 = vpack.c.b16 %v575, %v573
        %v668 = vpack.c.b16 %v576, %v574
        %v669 = vpack.c.b16 %v579, %v577
        %v670 = vpack.c.b16 %v580, %v578
        %v671 = vpack.c.b16 %v583, %v581
        %v672 = vpack.c.b16 %v584, %v582
        %v673 = vpack.c.b16 %v587, %v585
        %v674 = vpack.c.b16 %v588, %v586
        %v675 = vpack.c.b16 %v591, %v589
        %v676 = vpack.c.b16 %v592, %v590
        %v677 = vpack.c.b16 %v595, %v593
        %v678 = vpack.c.b16 %v596, %v594
        %v679 = vpack.c.b16 %v599, %v597
        %v680 = vpack.c.b16 %v600, %v598
        %v681 = vpack.c.b16 %v603, %v601
        %v682 = vpack.c.b16 %v604, %v602
        %v683 = vpack.c.b16 %v607, %v605
        %v684 = vpack.c.b16 %v608, %v606
        %v685 = vpack.c.b16 %v611, %v609
        %v686 = vpack.c.b16 %v612, %v610
        %v687 = vpack.c.b16 %v615, %v613
        %v688 = vpack.c.b16 %v616, %v614
        %v689 = vpack.c.b16 %v619, %v617
        %v690 = vpack.c.b16 %v620, %v618
        %v691 = vpack.c.b16 %v623, %v621
        %v692 = vpack.c.b16 %v624, %v622
        %v693 = vpack.c.b16 %v627, %v625
        %v694 = vpack.c.b16 %v628, %v626
        %v695 = vpack.c.b16 %v631, %v629
        %v696 = vpack.c.b16 %v632, %v630
        %v697 = vpack.c.b16 %v635, %v633
        %v698 = vpack.c.b16 %v636, %v634
        %v699 = vpack.c.b16 %v639, %v637
        %v700 = vpack.c.b16 %v640, %v638
        %v701 = vpack.c.b16 %v643, %v641
        %v702 = vpack.c.b16 %v644, %v642
        %v703 = vpack.c.b16 %v647, %v645
        %v704 = vpack.c.b16 %v648, %v646
        %v705 = vpack.c.b16 %v651, %v649
        %v706 = vpack.c.b16 %v652, %v650
        %v707 = vpack.c.b16 %v655, %v653
        %v708 = vpack.c.b16 %v656, %v654
        %v709 = vpack.c.b16 %v659, %v657
        %v710 = vpack.c.b16 %v660, %v658
        %v711 = vpack.c.b16 %v663, %v661
        %v712 = vpack.c.b16 %v664, %v662
        %761 = vmatpush.bf16.msra.mxu0 %v679
        %762 = vmatpush.bf16.msra.mxu0 %v677
        %763 = vmatpush.bf16.msra.mxu0 %v675
        %764 = vmatpush.bf16.msra.mxu0 %v673
        %765 = vmatpush.bf16.msra.mxu0 %v671
        %766 = vmatpush.bf16.msra.mxu0 %v669
        %767 = vmatpush.bf16.msra.mxu0 %v667
        %768 = vmatpush.bf16.msra.mxu0 %v665
        %769 = vmatmul.bf16.gmra.mxu0 %v464
        %v770 = vpop.f32.mrf.mxu0
        %v771 = vadd.f32 %v517, %v770
        %v772 = vpop.f32.mrf.mxu0
        %v773 = vadd.f32 %v517, %v772
        %774 = vdwg.mxu0
        %775 = vmatpush.bf16.msra.mxu0 %v695
        %776 = vmatpush.bf16.msra.mxu0 %v693
        %777 = vmatpush.bf16.msra.mxu0 %v691
        %778 = vmatpush.bf16.msra.mxu0 %v689
        %779 = vmatpush.bf16.msra.mxu0 %v687
        %780 = vmatpush.bf16.msra.mxu0 %v685
        %781 = vmatpush.bf16.msra.mxu0 %v683
        %782 = vmatpush.bf16.msra.mxu0 %v681
        %783 = vmatmul.bf16.gmra.mxu0 %v465
        %v784 = vpop.f32.mrf.mxu0
        %v785 = vadd.f32 %v771, %v784
        %v786 = vpop.f32.mrf.mxu0
        %v787 = vadd.f32 %v773, %v786
        %788 = vdwg.mxu0
        %789 = vmatpush.bf16.msra.mxu0 %v711
        %790 = vmatpush.bf16.msra.mxu0 %v709
        %791 = vmatpush.bf16.msra.mxu0 %v707
        %792 = vmatpush.bf16.msra.mxu0 %v705
        %793 = vmatpush.bf16.msra.mxu0 %v703
        %794 = vmatpush.bf16.msra.mxu0 %v701
        %795 = vmatpush.bf16.msra.mxu0 %v699
        %796 = vmatpush.bf16.msra.mxu0 %v697
        %797 = vmatmul.bf16.gmra.mxu0 %v466
        %v798 = vpop.f32.mrf.mxu0
        %v799 = vadd.f32 %v785, %v798
        %v800 = vpop.f32.mrf.mxu0
        %v801 = vadd.f32 %v787, %v800
        %802 = vdwg.mxu0
        %803 = vmatpush.bf16.msra.mxu0 %v680
        %804 = vmatpush.bf16.msra.mxu0 %v678
        %805 = vmatpush.bf16.msra.mxu0 %v676
        %806 = vmatpush.bf16.msra.mxu0 %v674
        %807 = vmatpush.bf16.msra.mxu0 %v672
        %808 = vmatpush.bf16.msra.mxu0 %v670
        %809 = vmatpush.bf16.msra.mxu0 %v668
        %810 = vmatpush.bf16.msra.mxu0 %v666
        %811 = vmatmul.bf16.gmra.mxu0 %v464
        %v812 = vpop.f32.mrf.mxu0
        %v813 = vadd.f32 %v518, %v812
        %v814 = vpop.f32.mrf.mxu0
        %v815 = vadd.f32 %v518, %v814
        %816 = vdwg.mxu0
        %817 = vmatpush.bf16.msra.mxu0 %v696
        %818 = vmatpush.bf16.msra.mxu0 %v694
        %819 = vmatpush.bf16.msra.mxu0 %v692
        %820 = vmatpush.bf16.msra.mxu0 %v690
        %821 = vmatpush.bf16.msra.mxu0 %v688
        %822 = vmatpush.bf16.msra.mxu0 %v686
        %823 = vmatpush.bf16.msra.mxu0 %v684
        %824 = vmatpush.bf16.msra.mxu0 %v682
        %825 = vmatmul.bf16.gmra.mxu0 %v465
        %v826 = vpop.f32.mrf.mxu0
        %v827 = vadd.f32 %v813, %v826
        %v828 = vpop.f32.mrf.mxu0
        %v829 = vadd.f32 %v815, %v828
        %830 = vdwg.mxu0
        %831 = vmatpush.bf16.msra.mxu0 %v712
        %832 = vmatpush.bf16.msra.mxu0 %v710
        %833 = vmatpush.bf16.msra.mxu0 %v708
        %834 = vmatpush.bf16.msra.mxu0 %v706
        %835 = vmatpush.bf16.msra.mxu0 %v704
        %836 = vmatpush.bf16.msra.mxu0 %v702
        %837 = vmatpush.bf16.msra.mxu0 %v700
        %838 = vmatpush.bf16.msra.mxu0 %v698
        %839 = vmatmul.bf16.gmra.mxu0 %v466
        %v840 = vpop.f32.mrf.mxu0
        %v841 = vadd.f32 %v827, %v840
        %v842 = vpop.f32.mrf.mxu0
        %v843 = vadd.f32 %v829, %v842
        %844 = vdwg.mxu0
        %s845 = sld [smem:[#allocation13 + $0x1]]
        %v846 = vstv %s845
        %v847 = vmul.f32 %v799, %v846
        %v848 = vmul.f32 %v841, %v846
        %v849 = vmul.f32 %v801, %v846
        %v850 = vmul.f32 %v843, %v846
        %v851 = vxor.u32 %v847, 2147483648
        %v852 = vxor.u32 %v848, 2147483648
        %v853 = vxor.u32 %v849, 2147483648
        %v854 = vxor.u32 %v850, 2147483648
        %v855 = vmul.f32 %v851, 1.442695
        %v856 = vpow.pop %v855
        %v857 = vmul.f32 %v852, 1.442695
        %v858 = vpow.pop %v857
        %v859 = vmul.f32 %v853, 1.442695
        %v860 = vpow.pop %v859
        %v861 = vmul.f32 %v854, 1.442695
        %v862 = vpow.pop %v861
        %v863 = vadd.f32 %v856, 1.0
        %v864 = vadd.f32 %v858, 1.0
        %v865 = vadd.f32 %v860, 1.0
        %v866 = vadd.f32 %v862, 1.0
        %v867 = vrcp.pop %v863
        %v868 = vmul.f32 %v863, %v867
        %v869 = vsub.f32 1.0, %v868
        %v870 = vmul.f32 %v867, %v869
        %v871 = vadd.f32 %v867, %v870
        %vm872 = vweird.f32 %v863
        %vm873 = vweird.f32 %v867
        %vm874 = vmor %vm872, %vm873
        %v875 = vsel %vm874, %v867, %v871
        %v876 = vand.u32 2147483647, %v863
        %vm877 = vcmp.eq.f32.partialorder %v876, 8.507059e+37
        %v878 = vand.u32 %v863, 2147483648
        %v879 = vor.u32 1.1754944e-38, %v878
        %v880 = vsel %vm877, %v879, %v875
        %v881 = vmul.f32 1.0, %v880
        %v882 = vrcp.pop %v864
        %v883 = vmul.f32 %v864, %v882
        %v884 = vsub.f32 1.0, %v883
        %v885 = vmul.f32 %v882, %v884
        %v886 = vadd.f32 %v882, %v885
        %vm887 = vweird.f32 %v864
        %vm888 = vweird.f32 %v882
        %vm889 = vmor %vm887, %vm888
        %v890 = vsel %vm889, %v882, %v886
        %v891 = vand.u32 2147483647, %v864
        %vm892 = vcmp.eq.f32.partialorder %v891, 8.507059e+37
        %v893 = vand.u32 %v864, 2147483648
        %v894 = vor.u32 1.1754944e-38, %v893
        %v895 = vsel %vm892, %v894, %v890
        %v896 = vmul.f32 1.0, %v895
        %v897 = vrcp.pop %v865
        %v898 = vmul.f32 %v865, %v897
        %v899 = vsub.f32 1.0, %v898
        %v900 = vmul.f32 %v897, %v899
        %v901 = vadd.f32 %v897, %v900
        %vm902 = vweird.f32 %v865
        %vm903 = vweird.f32 %v897
        %vm904 = vmor %vm902, %vm903
        %v905 = vsel %vm904, %v897, %v901
        %v906 = vand.u32 2147483647, %v865
        %vm907 = vcmp.eq.f32.partialorder %v906, 8.507059e+37
        %v908 = vand.u32 %v865, 2147483648
        %v909 = vor.u32 1.1754944e-38, %v908
        %v910 = vsel %vm907, %v909, %v905
        %v911 = vmul.f32 1.0, %v910
        %v912 = vrcp.pop %v866
        %v913 = vmul.f32 %v866, %v912
        %v914 = vsub.f32 1.0, %v913
        %v915 = vmul.f32 %v912, %v914
        %v916 = vadd.f32 %v912, %v915
        %vm917 = vweird.f32 %v866
        %vm918 = vweird.f32 %v912
        %vm919 = vmor %vm917, %vm918
        %v920 = vsel %vm919, %v912, %v916
        %v921 = vand.u32 2147483647, %v866
        %vm922 = vcmp.eq.f32.partialorder %v921, 8.507059e+37
        %v923 = vand.u32 %v866, 2147483648
        %v924 = vor.u32 1.1754944e-38, %v923
        %v925 = vsel %vm922, %v924, %v920
        %v926 = vmul.f32 1.0, %v925
        %v927 = vmul.f32 %v799, %v881
        %v928 = vmul.f32 %v841, %v896
        %v929 = vmul.f32 %v801, %v911
        %v930 = vmul.f32 %v843, %v926
        %v931 = vpack.c.bf16 %v929, %v927
        %v932 = vpack.c.bf16 %v930, %v928
        %v933 = vld [vmem:[#allocation10] sm:$0xff]
        %v934 = vld [vmem:[#allocation10 + $0x8] sm:$0xff]
        %v935 = vld [vmem:[#allocation10 + $0x10] sm:$0xff]
        %v936 = vld [vmem:[#allocation10 + $0x18] sm:$0xff]
        %v937 = vld [vmem:[#allocation10 + $0x20] sm:$0xff]
        %v938 = vld [vmem:[#allocation10 + $0x28] sm:$0xff]
        %v939 = vld [vmem:[#allocation10 + $0x30] sm:$0xff]
        %v940 = vld [vmem:[#allocation10 + $0x38] sm:$0xff]
        %v941 = vld [vmem:[#allocation10 + $0x40] sm:$0xff]
        %v942 = vld [vmem:[#allocation10 + $0x48] sm:$0xff]
        %v943 = vld [vmem:[#allocation10 + $0x50] sm:$0xff]
        %v944 = vld [vmem:[#allocation10 + $0x58] sm:$0xff]
        %v945 = vld [vmem:[#allocation10 + $0x60] sm:$0xff]
        %v946 = vld [vmem:[#allocation10 + $0x68] sm:$0xff]
        %v947 = vld [vmem:[#allocation10 + $0x70] sm:$0xff]
        %v948 = vld [vmem:[#allocation10 + $0x78] sm:$0xff]
        %v949 = vld [vmem:[#allocation10 + $0x80] sm:$0xff]
        %v950 = vld [vmem:[#allocation10 + $0x88] sm:$0xff]
        %v951 = vld [vmem:[#allocation10 + $0x90] sm:$0xff]
        %v952 = vld [vmem:[#allocation10 + $0x98] sm:$0xff]
        %v953 = vld [vmem:[#allocation10 + $0xa0] sm:$0xff]
        %v954 = vld [vmem:[#allocation10 + $0xa8] sm:$0xff]
        %v955 = vld [vmem:[#allocation10 + $0xb0] sm:$0xff]
        %v956 = vld [vmem:[#allocation10 + $0xb8] sm:$0xff]
        %v957 = vld [vmem:[#allocation10 + $0xc0] sm:$0xff]
        %v958 = vld [vmem:[#allocation10 + $0xc8] sm:$0xff]
        %v959 = vld [vmem:[#allocation10 + $0xd0] sm:$0xff]
        %v960 = vld [vmem:[#allocation10 + $0xd8] sm:$0xff]
        %v961 = vld [vmem:[#allocation10 + $0xe0] sm:$0xff]
        %v962 = vld [vmem:[#allocation10 + $0xe8] sm:$0xff]
        %v963 = vld [vmem:[#allocation10 + $0xf0] sm:$0xff]
        %v964 = vld [vmem:[#allocation10 + $0xf8] sm:$0xff]
        %v965 = vld [vmem:[%s5] sm:$0x3]
        %v967 = vperm.slane %v965, 0
        %v968 = vperm.slane %v965, 1
        %v1003 = vunpack.c.l.b16 %v933
        %v1004 = vunpack.c.h.b16 %v933
        %v1005 = vunpack.c.l.b16 %v934
        %v1006 = vunpack.c.h.b16 %v934
        %v1007 = vunpack.c.l.b16 %v935
        %v1008 = vunpack.c.h.b16 %v935
        %v1009 = vunpack.c.l.b16 %v936
        %v1010 = vunpack.c.h.b16 %v936
        %v1011 = vunpack.c.l.b16 %v937
        %v1012 = vunpack.c.h.b16 %v937
        %v1013 = vunpack.c.l.b16 %v938
        %v1014 = vunpack.c.h.b16 %v938
        %v1015 = vunpack.c.l.b16 %v939
        %v1016 = vunpack.c.h.b16 %v939
        %v1017 = vunpack.c.l.b16 %v940
        %v1018 = vunpack.c.h.b16 %v940
        %v1019 = vunpack.c.l.b16 %v941
        %v1020 = vunpack.c.h.b16 %v941
        %v1021 = vunpack.c.l.b16 %v942
        %v1022 = vunpack.c.h.b16 %v942
        %v1023 = vunpack.c.l.b16 %v943
        %v1024 = vunpack.c.h.b16 %v943
        %v1025 = vunpack.c.l.b16 %v944
        %v1026 = vunpack.c.h.b16 %v944
        %v1027 = vunpack.c.l.b16 %v945
        %v1028 = vunpack.c.h.b16 %v945
        %v1029 = vunpack.c.l.b16 %v946
        %v1030 = vunpack.c.h.b16 %v946
        %v1031 = vunpack.c.l.b16 %v947
        %v1032 = vunpack.c.h.b16 %v947
        %v1033 = vunpack.c.l.b16 %v948
        %v1034 = vunpack.c.h.b16 %v948
        %v1035 = vunpack.c.l.b16 %v949
        %v1036 = vunpack.c.h.b16 %v949
        %v1037 = vunpack.c.l.b16 %v950
        %v1038 = vunpack.c.h.b16 %v950
        %v1039 = vunpack.c.l.b16 %v951
        %v1040 = vunpack.c.h.b16 %v951
        %v1041 = vunpack.c.l.b16 %v952
        %v1042 = vunpack.c.h.b16 %v952
        %v1043 = vunpack.c.l.b16 %v953
        %v1044 = vunpack.c.h.b16 %v953
        %v1045 = vunpack.c.l.b16 %v954
        %v1046 = vunpack.c.h.b16 %v954
        %v1047 = vunpack.c.l.b16 %v955
        %v1048 = vunpack.c.h.b16 %v955
        %v1049 = vunpack.c.l.b16 %v956
        %v1050 = vunpack.c.h.b16 %v956
        %v1051 = vunpack.c.l.b16 %v957
        %v1052 = vunpack.c.h.b16 %v957
        %v1053 = vunpack.c.l.b16 %v958
        %v1054 = vunpack.c.h.b16 %v958
        %v1055 = vunpack.c.l.b16 %v959
        %v1056 = vunpack.c.h.b16 %v959
        %v1057 = vunpack.c.l.b16 %v960
        %v1058 = vunpack.c.h.b16 %v960
        %v1059 = vunpack.c.l.b16 %v961
        %v1060 = vunpack.c.h.b16 %v961
        %v1061 = vunpack.c.l.b16 %v962
        %v1062 = vunpack.c.h.b16 %v962
        %v1063 = vunpack.c.l.b16 %v963
        %v1064 = vunpack.c.h.b16 %v963
        %v1065 = vunpack.c.l.b16 %v964
        %v1066 = vunpack.c.h.b16 %v964
        %v1067 = vpack.c.b16 %v1005, %v1003
        %v1068 = vpack.c.b16 %v1006, %v1004
        %v1069 = vpack.c.b16 %v1009, %v1007
        %v1070 = vpack.c.b16 %v1010, %v1008
        %v1071 = vpack.c.b16 %v1013, %v1011
        %v1072 = vpack.c.b16 %v1014, %v1012
        %v1073 = vpack.c.b16 %v1017, %v1015
        %v1074 = vpack.c.b16 %v1018, %v1016
        %v1075 = vpack.c.b16 %v1021, %v1019
        %v1076 = vpack.c.b16 %v1022, %v1020
        %v1077 = vpack.c.b16 %v1025, %v1023
        %v1078 = vpack.c.b16 %v1026, %v1024
        %v1079 = vpack.c.b16 %v1029, %v1027
        %v1080 = vpack.c.b16 %v1030, %v1028
        %v1081 = vpack.c.b16 %v1033, %v1031
        %v1082 = vpack.c.b16 %v1034, %v1032
        %v1083 = vpack.c.b16 %v1037, %v1035
        %v1084 = vpack.c.b16 %v1038, %v1036
        %v1085 = vpack.c.b16 %v1041, %v1039
        %v1086 = vpack.c.b16 %v1042, %v1040
        %v1087 = vpack.c.b16 %v1045, %v1043
        %v1088 = vpack.c.b16 %v1046, %v1044
        %v1089 = vpack.c.b16 %v1049, %v1047
        %v1090 = vpack.c.b16 %v1050, %v1048
        %v1091 = vpack.c.b16 %v1053, %v1051
        %v1092 = vpack.c.b16 %v1054, %v1052
        %v1093 = vpack.c.b16 %v1057, %v1055
        %v1094 = vpack.c.b16 %v1058, %v1056
        %v1095 = vpack.c.b16 %v1061, %v1059
        %v1096 = vpack.c.b16 %v1062, %v1060
        %v1097 = vpack.c.b16 %v1065, %v1063
        %v1098 = vpack.c.b16 %v1066, %v1064
        %1131 = vmatpush.bf16.msra.mxu0 %v1081
        %1132 = vmatpush.bf16.msra.mxu0 %v1079
        %1133 = vmatpush.bf16.msra.mxu0 %v1077
        %1134 = vmatpush.bf16.msra.mxu0 %v1075
        %1135 = vmatpush.bf16.msra.mxu0 %v1073
        %1136 = vmatpush.bf16.msra.mxu0 %v1071
        %1137 = vmatpush.bf16.msra.mxu0 %v1069
        %1138 = vmatpush.bf16.msra.mxu0 %v1067
        %1139 = vmatmul.bf16.gmra.mxu0 %v931
        %v1140 = vpop.f32.mrf.mxu0
        %v1141 = vadd.f32 %v967, %v1140
        %v1142 = vpop.f32.mrf.mxu0
        %v1143 = vadd.f32 %v967, %v1142
        %1144 = vdwg.mxu0
        %1145 = vmatpush.bf16.msra.mxu0 %v1097
        %1146 = vmatpush.bf16.msra.mxu0 %v1095
        %1147 = vmatpush.bf16.msra.mxu0 %v1093
        %1148 = vmatpush.bf16.msra.mxu0 %v1091
        %1149 = vmatpush.bf16.msra.mxu0 %v1089
        %1150 = vmatpush.bf16.msra.mxu0 %v1087
        %1151 = vmatpush.bf16.msra.mxu0 %v1085
        %1152 = vmatpush.bf16.msra.mxu0 %v1083
        %1153 = vmatmul.bf16.gmra.mxu0 %v932
        %v1154 = vpop.f32.mrf.mxu0
        %v1155 = vadd.f32 %v1141, %v1154
        %v1156 = vpop.f32.mrf.mxu0
        %v1157 = vadd.f32 %v1143, %v1156
        %1158 = vdwg.mxu0
        %1159 = vmatpush.bf16.msra.mxu0 %v1082
        %1160 = vmatpush.bf16.msra.mxu0 %v1080
        %1161 = vmatpush.bf16.msra.mxu0 %v1078
        %1162 = vmatpush.bf16.msra.mxu0 %v1076
        %1163 = vmatpush.bf16.msra.mxu0 %v1074
        %1164 = vmatpush.bf16.msra.mxu0 %v1072
        %1165 = vmatpush.bf16.msra.mxu0 %v1070
        %1166 = vmatpush.bf16.msra.mxu0 %v1068
        %1167 = vmatmul.bf16.gmra.mxu0 %v931
        %v1168 = vpop.f32.mrf.mxu0
        %v1169 = vadd.f32 %v968, %v1168
        %v1170 = vpop.f32.mrf.mxu0
        %v1171 = vadd.f32 %v968, %v1170
        %1172 = vdwg.mxu0
        %1173 = vmatpush.bf16.msra.mxu0 %v1098
        %1174 = vmatpush.bf16.msra.mxu0 %v1096
        %1175 = vmatpush.bf16.msra.mxu0 %v1094
        %1176 = vmatpush.bf16.msra.mxu0 %v1092
        %1177 = vmatpush.bf16.msra.mxu0 %v1090
        %1178 = vmatpush.bf16.msra.mxu0 %v1088
        %1179 = vmatpush.bf16.msra.mxu0 %v1086
        %1180 = vmatpush.bf16.msra.mxu0 %v1084
        %1181 = vmatmul.bf16.gmra.mxu0 %v932
        %v1182 = vpop.f32.mrf.mxu0
        %v1183 = vadd.f32 %v1169, %v1182
        %v1184 = vpop.f32.mrf.mxu0
        %v1185 = vadd.f32 %v1171, %v1184
        %1186 = vdwg.mxu0
        %s1187 = sld [smem:[#allocation13 + $0x2]]
        %v1188 = vstv %s1187
        %v1189 = vmul.f32 %v1155, %v1188
        %v1190 = vmul.f32 %v1183, %v1188
        %v1191 = vmul.f32 %v1157, %v1188
        %v1192 = vmul.f32 %v1185, %v1188
        %v1193 = vxor.u32 %v1189, 2147483648
        %v1194 = vxor.u32 %v1190, 2147483648
        %v1195 = vxor.u32 %v1191, 2147483648
        %v1196 = vxor.u32 %v1192, 2147483648
        %v1197 = vmul.f32 %v1193, 1.442695
        %v1198 = vpow.pop %v1197
        %v1199 = vmul.f32 %v1194, 1.442695
        %v1200 = vpow.pop %v1199
        %v1201 = vmul.f32 %v1195, 1.442695
        %v1202 = vpow.pop %v1201
        %v1203 = vmul.f32 %v1196, 1.442695
        %v1204 = vpow.pop %v1203
        %v1205 = vadd.f32 %v1198, 1.0
        %v1206 = vadd.f32 %v1200, 1.0
        %v1207 = vadd.f32 %v1202, 1.0
        %v1208 = vadd.f32 %v1204, 1.0
        %v1209 = vrcp.pop %v1205
        %v1210 = vmul.f32 %v1205, %v1209
        %v1211 = vsub.f32 1.0, %v1210
        %v1212 = vmul.f32 %v1209, %v1211
        %v1213 = vadd.f32 %v1209, %v1212
        %vm1214 = vweird.f32 %v1205
        %vm1215 = vweird.f32 %v1209
        %vm1216 = vmor %vm1214, %vm1215
        %v1217 = vsel %vm1216, %v1209, %v1213
        %v1218 = vand.u32 2147483647, %v1205
        %vm1219 = vcmp.eq.f32.partialorder %v1218, 8.507059e+37
        %v1220 = vand.u32 %v1205, 2147483648
        %v1221 = vor.u32 1.1754944e-38, %v1220
        %v1222 = vsel %vm1219, %v1221, %v1217
        %v1223 = vmul.f32 1.0, %v1222
        %v1224 = vrcp.pop %v1206
        %v1225 = vmul.f32 %v1206, %v1224
        %v1226 = vsub.f32 1.0, %v1225
        %v1227 = vmul.f32 %v1224, %v1226
        %v1228 = vadd.f32 %v1224, %v1227
        %vm1229 = vweird.f32 %v1206
        %vm1230 = vweird.f32 %v1224
        %vm1231 = vmor %vm1229, %vm1230
        %v1232 = vsel %vm1231, %v1224, %v1228
        %v1233 = vand.u32 2147483647, %v1206
        %vm1234 = vcmp.eq.f32.partialorder %v1233, 8.507059e+37
        %v1235 = vand.u32 %v1206, 2147483648
        %v1236 = vor.u32 1.1754944e-38, %v1235
        %v1237 = vsel %vm1234, %v1236, %v1232
        %v1238 = vmul.f32 1.0, %v1237
        %v1239 = vrcp.pop %v1207
        %v1240 = vmul.f32 %v1207, %v1239
        %v1241 = vsub.f32 1.0, %v1240
        %v1242 = vmul.f32 %v1239, %v1241
        %v1243 = vadd.f32 %v1239, %v1242
        %vm1244 = vweird.f32 %v1207
        %vm1245 = vweird.f32 %v1239
        %vm1246 = vmor %vm1244, %vm1245
        %v1247 = vsel %vm1246, %v1239, %v1243
        %v1248 = vand.u32 2147483647, %v1207
        %vm1249 = vcmp.eq.f32.partialorder %v1248, 8.507059e+37
        %v1250 = vand.u32 %v1207, 2147483648
        %v1251 = vor.u32 1.1754944e-38, %v1250
        %v1252 = vsel %vm1249, %v1251, %v1247
        %v1253 = vmul.f32 1.0, %v1252
        %v1254 = vrcp.pop %v1208
        %v1255 = vmul.f32 %v1208, %v1254
        %v1256 = vsub.f32 1.0, %v1255
        %v1257 = vmul.f32 %v1254, %v1256
        %v1258 = vadd.f32 %v1254, %v1257
        %vm1259 = vweird.f32 %v1208
        %vm1260 = vweird.f32 %v1254
        %vm1261 = vmor %vm1259, %vm1260
        %v1262 = vsel %vm1261, %v1254, %v1258
        %v1263 = vand.u32 2147483647, %v1208
        %vm1264 = vcmp.eq.f32.partialorder %v1263, 8.507059e+37
        %v1265 = vand.u32 %v1208, 2147483648
        %v1266 = vor.u32 1.1754944e-38, %v1265
        %v1267 = vsel %vm1264, %v1266, %v1262
        %v1268 = vmul.f32 1.0, %v1267
        %v1269 = vmul.f32 %v1155, %v1223
        %v1270 = vmul.f32 %v1183, %v1238
        %v1271 = vmul.f32 %v1157, %v1253
        %v1272 = vmul.f32 %v1185, %v1268
        %v1273 = vlaneseq
        %vm1274 = vcmp.ge.s32.totalorder %v1273, 0
        %vm1275 = vcmp.lt.s32.totalorder %v1273, 256
        %vm1276 = vmand %vm1274, %vm1275
        %1277 = vst.msk [vmem:[#allocation3] ss:$8 sm:$0x3] %vm1276, 0.0
        %1278 = vst.msk [vmem:[#allocation3] ss:$8 sm:$0x0] %vm1276, 0.0
        %v1283 = vrot.slane %v1269, 7
        %v1284 = vrot.slane %v1270, 7
        %v1285 = vrot.slane %v1271, 7
        %v1286 = vsel %vm439, %v1283, %v1285
        %v1287 = vrot.slane %v1272, 7
        %v1288 = vsel %vm439, %v1284, %v1287
        %1293 = vst [vmem:[#allocation3] sm:$0xfe] %v1283
        %1294 = vst [vmem:[#allocation3 + $0x8] sm:$0xfe] %v1284
        %1295 = vst [vmem:[#allocation3 + $0x30] sm:$0xff] %v1286
        %1296 = vst [vmem:[#allocation3 + $0x38] sm:$0xff] %v1288
        %1297 = vst [vmem:[#allocation3 + $0x10] sm:$0xff] %v1269
        %1298 = vst [vmem:[#allocation3 + $0x18] sm:$0xff] %v1270
        %1299 = vst [vmem:[#allocation3 + $0x40] sm:$0xff] %v1271
        %1300 = vst [vmem:[#allocation3 + $0x48] sm:$0xff] %v1272
        %s1301 = scalar_lea.vmem [#allocation3], 87
        %1302 = vst.msk [vmem:[%s1301] ss:$8 sm:$0x3] %vm1276, 0.0
        %1303 = vst.msk [vmem:[%s1301] ss:$8 sm:$0x0] %vm1276, 0.0
        %v1304 = vrot.slane %v1269, 1
        %v1305 = vrot.slane %v1271, 1
        %v1306 = vsel %vm450, %v1304, %v1305
        %v1307 = vrot.slane %v1270, 1
        %v1308 = vrot.slane %v1272, 1
        %v1309 = vsel %vm450, %v1307, %v1308
        %1314 = vst [vmem:[#allocation3 + $0x20] sm:$0xff] %v1306
        %1315 = vst [vmem:[#allocation3 + $0x28] sm:$0xff] %v1309
        %1316 = vst [vmem:[#allocation3 + $0x50] sm:$0x7f] %v1305
        %1317 = vst [vmem:[#allocation3 + $0x58] sm:$0x7f] %v1308
        %v1318 = vld [vmem:[#allocation3] sm:$0xff]
        %v1319 = vld [vmem:[#allocation3 + $0x8] sm:$0xff]
        %v1320 = vld [vmem:[#allocation3 + $0x10] sm:$0xff]
        %v1321 = vld [vmem:[#allocation3 + $0x18] sm:$0xff]
        %v1322 = vld [vmem:[#allocation3 + $0x20] sm:$0xff]
        %v1323 = vld [vmem:[#allocation3 + $0x28] sm:$0xff]
        %v1324 = vld [vmem:[#allocation3 + $0x30] sm:$0xff]
        %v1325 = vld [vmem:[#allocation3 + $0x38] sm:$0xff]
        %v1326 = vld [vmem:[#allocation3 + $0x40] sm:$0xff]
        %v1327 = vld [vmem:[#allocation3 + $0x48] sm:$0xff]
        %v1328 = vld [vmem:[#allocation3 + $0x50] sm:$0xff]
        %v1329 = vld [vmem:[#allocation3 + $0x58] sm:$0xff]
        %v1330 = vpack.c.bf16 %v1324, %v1318
        %v1331 = vpack.c.bf16 %v1325, %v1319
        %v1332 = vpack.c.bf16 %v1326, %v1320
        %v1333 = vpack.c.bf16 %v1327, %v1321
        %v1334 = vpack.c.bf16 %v1328, %v1322
        %v1335 = vpack.c.bf16 %v1329, %v1323
        %v1336 = vld [vmem:[#allocation11] sm:$0xf]
        %v1337 = vld [vmem:[#allocation11 + $0x4] sm:$0xf]
        %v1338 = vld [vmem:[#allocation11 + $0x8] sm:$0xf]
        %v1339 = vld [vmem:[#allocation11 + $0xc] sm:$0xf]
        %v1340 = vld [vmem:[#allocation11 + $0x10] sm:$0xf]
        %v1341 = vld [vmem:[#allocation11 + $0x14] sm:$0xf]
        %v1342 = vld [vmem:[#allocation11 + $0x18] sm:$0xf]
        %v1343 = vld [vmem:[#allocation11 + $0x1c] sm:$0xf]
        %v1344 = vld [vmem:[#allocation11 + $0x20] sm:$0xf]
        %v1345 = vld [vmem:[#allocation11 + $0x24] sm:$0xf]
        %v1346 = vld [vmem:[#allocation11 + $0x28] sm:$0xf]
        %v1347 = vld [vmem:[#allocation11 + $0x2c] sm:$0xf]
        %v1348 = vld [vmem:[#allocation11 + $0x30] sm:$0xf]
        %v1349 = vld [vmem:[#allocation11 + $0x34] sm:$0xf]
        %v1350 = vld [vmem:[#allocation11 + $0x38] sm:$0xf]
        %v1351 = vld [vmem:[#allocation11 + $0x3c] sm:$0xf]
        %v1352 = vld [vmem:[#allocation11 + $0x40] sm:$0xf]
        %v1353 = vld [vmem:[#allocation11 + $0x44] sm:$0xf]
        %v1354 = vld [vmem:[#allocation11 + $0x48] sm:$0xf]
        %v1355 = vld [vmem:[#allocation11 + $0x4c] sm:$0xf]
        %v1356 = vld [vmem:[#allocation11 + $0x50] sm:$0xf]
        %v1357 = vld [vmem:[#allocation11 + $0x54] sm:$0xf]
        %v1358 = vld [vmem:[#allocation11 + $0x58] sm:$0xf]
        %v1359 = vld [vmem:[#allocation11 + $0x5c] sm:$0xf]
        %v1360 = vld [vmem:[#allocation11 + $0x60] sm:$0xf]
        %v1361 = vld [vmem:[#allocation11 + $0x64] sm:$0xf]
        %v1362 = vld [vmem:[#allocation11 + $0x68] sm:$0xf]
        %v1363 = vld [vmem:[#allocation11 + $0x6c] sm:$0xf]
        %v1364 = vld [vmem:[#allocation11 + $0x70] sm:$0xf]
        %v1365 = vld [vmem:[#allocation11 + $0x74] sm:$0xf]
        %v1366 = vld [vmem:[#allocation11 + $0x78] sm:$0xf]
        %v1367 = vld [vmem:[#allocation11 + $0x7c] sm:$0xf]
        %v1368 = vld [vmem:[#allocation11 + $0x80] sm:$0xf]
        %v1369 = vld [vmem:[#allocation11 + $0x84] sm:$0xf]
        %v1370 = vld [vmem:[#allocation11 + $0x88] sm:$0xf]
        %v1371 = vld [vmem:[#allocation11 + $0x8c] sm:$0xf]
        %v1372 = vld [vmem:[#allocation11 + $0x90] sm:$0xf]
        %v1373 = vld [vmem:[#allocation11 + $0x94] sm:$0xf]
        %v1374 = vld [vmem:[#allocation11 + $0x98] sm:$0xf]
        %v1375 = vld [vmem:[#allocation11 + $0x9c] sm:$0xf]
        %v1376 = vld [vmem:[#allocation11 + $0xa0] sm:$0xf]
        %v1377 = vld [vmem:[#allocation11 + $0xa4] sm:$0xf]
        %v1378 = vld [vmem:[#allocation11 + $0xa8] sm:$0xf]
        %v1379 = vld [vmem:[#allocation11 + $0xac] sm:$0xf]
        %v1380 = vld [vmem:[#allocation11 + $0xb0] sm:$0xf]
        %v1381 = vld [vmem:[#allocation11 + $0xb4] sm:$0xf]
        %v1382 = vld [vmem:[#allocation11 + $0xb8] sm:$0xf]
        %v1383 = vld [vmem:[#allocation11 + $0xbc] sm:$0xf]
        %v1384 = vld [vmem:[#allocation11 + $0xc0] sm:$0xf]
        %v1385 = vld [vmem:[#allocation11 + $0xc4] sm:$0xf]
        %v1386 = vld [vmem:[#allocation11 + $0xc8] sm:$0xf]
        %v1387 = vld [vmem:[#allocation11 + $0xcc] sm:$0xf]
        %v1388 = vld [vmem:[#allocation11 + $0xd0] sm:$0xf]
        %v1389 = vld [vmem:[#allocation11 + $0xd4] sm:$0xf]
        %v1390 = vld [vmem:[#allocation11 + $0xd8] sm:$0xf]
        %v1391 = vld [vmem:[#allocation11 + $0xdc] sm:$0xf]
        %v1392 = vld [vmem:[#allocation11 + $0xe0] sm:$0xf]
        %v1393 = vld [vmem:[#allocation11 + $0xe4] sm:$0xf]
        %v1394 = vld [vmem:[#allocation11 + $0xe8] sm:$0xf]
        %v1395 = vld [vmem:[#allocation11 + $0xec] sm:$0xf]
        %v1396 = vld [vmem:[#allocation11 + $0xf0] sm:$0xf]
        %v1397 = vld [vmem:[#allocation11 + $0xf4] sm:$0xf]
        %v1398 = vld [vmem:[#allocation11 + $0xf8] sm:$0xf]
        %v1399 = vld [vmem:[#allocation11 + $0xfc] sm:$0xf]
        %v1400 = vld [vmem:[#allocation11 + $0x100] sm:$0xf]
        %v1401 = vld [vmem:[#allocation11 + $0x104] sm:$0xf]
        %v1402 = vld [vmem:[#allocation11 + $0x108] sm:$0xf]
        %v1403 = vld [vmem:[#allocation11 + $0x10c] sm:$0xf]
        %v1404 = vld [vmem:[#allocation11 + $0x110] sm:$0xf]
        %v1405 = vld [vmem:[#allocation11 + $0x114] sm:$0xf]
        %v1406 = vld [vmem:[#allocation11 + $0x118] sm:$0xf]
        %v1407 = vld [vmem:[#allocation11 + $0x11c] sm:$0xf]
        %v1408 = vld [vmem:[#allocation11 + $0x120] sm:$0xf]
        %v1409 = vld [vmem:[#allocation11 + $0x124] sm:$0xf]
        %v1410 = vld [vmem:[#allocation11 + $0x128] sm:$0xf]
        %v1411 = vld [vmem:[#allocation11 + $0x12c] sm:$0xf]
        %v1412 = vld [vmem:[#allocation11 + $0x130] sm:$0xf]
        %v1413 = vld [vmem:[#allocation11 + $0x134] sm:$0xf]
        %v1414 = vld [vmem:[#allocation11 + $0x138] sm:$0xf]
        %v1415 = vld [vmem:[#allocation11 + $0x13c] sm:$0xf]
        %v1416 = vld [vmem:[#allocation11 + $0x140] sm:$0xf]
        %v1417 = vld [vmem:[#allocation11 + $0x144] sm:$0xf]
        %v1418 = vld [vmem:[#allocation11 + $0x148] sm:$0xf]
        %v1419 = vld [vmem:[#allocation11 + $0x14c] sm:$0xf]
        %v1420 = vld [vmem:[#allocation11 + $0x150] sm:$0xf]
        %v1421 = vld [vmem:[#allocation11 + $0x154] sm:$0xf]
        %v1422 = vld [vmem:[#allocation11 + $0x158] sm:$0xf]
        %v1423 = vld [vmem:[#allocation11 + $0x15c] sm:$0xf]
        %v1424 = vld [vmem:[#allocation11 + $0x160] sm:$0xf]
        %v1425 = vld [vmem:[#allocation11 + $0x164] sm:$0xf]
        %v1426 = vld [vmem:[#allocation11 + $0x168] sm:$0xf]
        %v1427 = vld [vmem:[#allocation11 + $0x16c] sm:$0xf]
        %v1428 = vld [vmem:[#allocation11 + $0x170] sm:$0xf]
        %v1429 = vld [vmem:[#allocation11 + $0x174] sm:$0xf]
        %v1430 = vld [vmem:[#allocation11 + $0x178] sm:$0xf]
        %v1431 = vld [vmem:[#allocation11 + $0x17c] sm:$0xf]
        %v1432 = vld [vmem:[%s6] sm:$0x1]
        %v1434 = vperm.slane %v1432, 0
        %v1532 = vunpack.c.l.b16 %v1336
        %v1533 = vunpack.c.l.b16 %v1337
        %v1534 = vunpack.c.l.b16 %v1338
        %v1535 = vunpack.c.l.b16 %v1339
        %v1536 = vunpack.c.l.b16 %v1340
        %v1537 = vunpack.c.l.b16 %v1341
        %v1538 = vunpack.c.l.b16 %v1342
        %v1539 = vunpack.c.l.b16 %v1343
        %v1540 = vunpack.c.l.b16 %v1344
        %v1541 = vunpack.c.l.b16 %v1345
        %v1542 = vunpack.c.l.b16 %v1346
        %v1543 = vunpack.c.l.b16 %v1347
        %v1544 = vunpack.c.l.b16 %v1348
        %v1545 = vunpack.c.l.b16 %v1349
        %v1546 = vunpack.c.l.b16 %v1350
        %v1547 = vunpack.c.l.b16 %v1351
        %v1548 = vunpack.c.l.b16 %v1352
        %v1549 = vunpack.c.l.b16 %v1353
        %v1550 = vunpack.c.l.b16 %v1354
        %v1551 = vunpack.c.l.b16 %v1355
        %v1552 = vunpack.c.l.b16 %v1356
        %v1553 = vunpack.c.l.b16 %v1357
        %v1554 = vunpack.c.l.b16 %v1358
        %v1555 = vunpack.c.l.b16 %v1359
        %v1556 = vunpack.c.l.b16 %v1360
        %v1557 = vunpack.c.l.b16 %v1361
        %v1558 = vunpack.c.l.b16 %v1362
        %v1559 = vunpack.c.l.b16 %v1363
        %v1560 = vunpack.c.l.b16 %v1364
        %v1561 = vunpack.c.l.b16 %v1365
        %v1562 = vunpack.c.l.b16 %v1366
        %v1563 = vunpack.c.l.b16 %v1367
        %v1564 = vunpack.c.l.b16 %v1368
        %v1565 = vunpack.c.l.b16 %v1369
        %v1566 = vunpack.c.l.b16 %v1370
        %v1567 = vunpack.c.l.b16 %v1371
        %v1568 = vunpack.c.l.b16 %v1372
        %v1569 = vunpack.c.l.b16 %v1373
        %v1570 = vunpack.c.l.b16 %v1374
        %v1571 = vunpack.c.l.b16 %v1375
        %v1572 = vunpack.c.l.b16 %v1376
        %v1573 = vunpack.c.l.b16 %v1377
        %v1574 = vunpack.c.l.b16 %v1378
        %v1575 = vunpack.c.l.b16 %v1379
        %v1576 = vunpack.c.l.b16 %v1380
        %v1577 = vunpack.c.l.b16 %v1381
        %v1578 = vunpack.c.l.b16 %v1382
        %v1579 = vunpack.c.l.b16 %v1383
        %v1580 = vunpack.c.l.b16 %v1384
        %v1581 = vunpack.c.l.b16 %v1385
        %v1582 = vunpack.c.l.b16 %v1386
        %v1583 = vunpack.c.l.b16 %v1387
        %v1584 = vunpack.c.l.b16 %v1388
        %v1585 = vunpack.c.l.b16 %v1389
        %v1586 = vunpack.c.l.b16 %v1390
        %v1587 = vunpack.c.l.b16 %v1391
        %v1588 = vunpack.c.l.b16 %v1392
        %v1589 = vunpack.c.l.b16 %v1393
        %v1590 = vunpack.c.l.b16 %v1394
        %v1591 = vunpack.c.l.b16 %v1395
        %v1592 = vunpack.c.l.b16 %v1396
        %v1593 = vunpack.c.l.b16 %v1397
        %v1594 = vunpack.c.l.b16 %v1398
        %v1595 = vunpack.c.l.b16 %v1399
        %v1596 = vunpack.c.l.b16 %v1400
        %v1597 = vunpack.c.l.b16 %v1401
        %v1598 = vunpack.c.l.b16 %v1402
        %v1599 = vunpack.c.l.b16 %v1403
        %v1600 = vunpack.c.l.b16 %v1404
        %v1601 = vunpack.c.l.b16 %v1405
        %v1602 = vunpack.c.l.b16 %v1406
        %v1603 = vunpack.c.l.b16 %v1407
        %v1604 = vunpack.c.l.b16 %v1408
        %v1605 = vunpack.c.l.b16 %v1409
        %v1606 = vunpack.c.l.b16 %v1410
        %v1607 = vunpack.c.l.b16 %v1411
        %v1608 = vunpack.c.l.b16 %v1412
        %v1609 = vunpack.c.l.b16 %v1413
        %v1610 = vunpack.c.l.b16 %v1414
        %v1611 = vunpack.c.l.b16 %v1415
        %v1612 = vunpack.c.l.b16 %v1416
        %v1613 = vunpack.c.l.b16 %v1417
        %v1614 = vunpack.c.l.b16 %v1418
        %v1615 = vunpack.c.l.b16 %v1419
        %v1616 = vunpack.c.l.b16 %v1420
        %v1617 = vunpack.c.l.b16 %v1421
        %v1618 = vunpack.c.l.b16 %v1422
        %v1619 = vunpack.c.l.b16 %v1423
        %v1620 = vunpack.c.l.b16 %v1424
        %v1621 = vunpack.c.l.b16 %v1425
        %v1622 = vunpack.c.l.b16 %v1426
        %v1623 = vunpack.c.l.b16 %v1427
        %v1624 = vunpack.c.l.b16 %v1428
        %v1625 = vunpack.c.l.b16 %v1429
        %v1626 = vunpack.c.l.b16 %v1430
        %v1627 = vunpack.c.l.b16 %v1431
        %v1628 = vpack.c.b16 %v1533, %v1532
        %v1629 = vpack.c.b16 %v1535, %v1534
        %v1630 = vpack.c.b16 %v1537, %v1536
        %v1631 = vpack.c.b16 %v1539, %v1538
        %v1632 = vpack.c.b16 %v1541, %v1540
        %v1633 = vpack.c.b16 %v1543, %v1542
        %v1634 = vpack.c.b16 %v1545, %v1544
        %v1635 = vpack.c.b16 %v1547, %v1546
        %v1636 = vpack.c.b16 %v1549, %v1548
        %v1637 = vpack.c.b16 %v1551, %v1550
        %v1638 = vpack.c.b16 %v1553, %v1552
        %v1639 = vpack.c.b16 %v1555, %v1554
        %v1640 = vpack.c.b16 %v1557, %v1556
        %v1641 = vpack.c.b16 %v1559, %v1558
        %v1642 = vpack.c.b16 %v1561, %v1560
        %v1643 = vpack.c.b16 %v1563, %v1562
        %v1644 = vpack.c.b16 %v1565, %v1564
        %v1645 = vpack.c.b16 %v1567, %v1566
        %v1646 = vpack.c.b16 %v1569, %v1568
        %v1647 = vpack.c.b16 %v1571, %v1570
        %v1648 = vpack.c.b16 %v1573, %v1572
        %v1649 = vpack.c.b16 %v1575, %v1574
        %v1650 = vpack.c.b16 %v1577, %v1576
        %v1651 = vpack.c.b16 %v1579, %v1578
        %v1652 = vpack.c.b16 %v1581, %v1580
        %v1653 = vpack.c.b16 %v1583, %v1582
        %v1654 = vpack.c.b16 %v1585, %v1584
        %v1655 = vpack.c.b16 %v1587, %v1586
        %v1656 = vpack.c.b16 %v1589, %v1588
        %v1657 = vpack.c.b16 %v1591, %v1590
        %v1658 = vpack.c.b16 %v1593, %v1592
        %v1659 = vpack.c.b16 %v1595, %v1594
        %v1660 = vpack.c.b16 %v1597, %v1596
        %v1661 = vpack.c.b16 %v1599, %v1598
        %v1662 = vpack.c.b16 %v1601, %v1600
        %v1663 = vpack.c.b16 %v1603, %v1602
        %v1664 = vpack.c.b16 %v1605, %v1604
        %v1665 = vpack.c.b16 %v1607, %v1606
        %v1666 = vpack.c.b16 %v1609, %v1608
        %v1667 = vpack.c.b16 %v1611, %v1610
        %v1668 = vpack.c.b16 %v1613, %v1612
        %v1669 = vpack.c.b16 %v1615, %v1614
        %v1670 = vpack.c.b16 %v1617, %v1616
        %v1671 = vpack.c.b16 %v1619, %v1618
        %v1672 = vpack.c.b16 %v1621, %v1620
        %v1673 = vpack.c.b16 %v1623, %v1622
        %v1674 = vpack.c.b16 %v1625, %v1624
        %v1675 = vpack.c.b16 %v1627, %v1626
        %1724 = vmatpush.bf16.msra.mxu0 %v1635
        %1725 = vmatpush.bf16.msra.mxu0 %v1634
        %1726 = vmatpush.bf16.msra.mxu0 %v1633
        %1727 = vmatpush.bf16.msra.mxu0 %v1632
        %1728 = vmatpush.bf16.msra.mxu0 %v1631
        %1729 = vmatpush.bf16.msra.mxu0 %v1630
        %1730 = vmatpush.bf16.msra.mxu0 %v1629
        %1731 = vmatpush.bf16.msra.mxu0 %v1628
        %1732 = vmatmul.bf16.gmra.mxu0 %v1330
        %v1733 = vpop.f32.mrf.mxu0
        %v1734 = vadd.f32 %v1434, %v1733
        %v1735 = vpop.f32.mrf.mxu0
        %v1736 = vadd.f32 %v1434, %v1735
        %1737 = vdwg.mxu0
        %1738 = vmatpush.bf16.msra.mxu0 %v1643
        %1739 = vmatpush.bf16.msra.mxu0 %v1642
        %1740 = vmatpush.bf16.msra.mxu0 %v1641
        %1741 = vmatpush.bf16.msra.mxu0 %v1640
        %1742 = vmatpush.bf16.msra.mxu0 %v1639
        %1743 = vmatpush.bf16.msra.mxu0 %v1638
        %1744 = vmatpush.bf16.msra.mxu0 %v1637
        %1745 = vmatpush.bf16.msra.mxu0 %v1636
        %1746 = vmatmul.bf16.gmra.mxu0 %v1331
        %v1747 = vpop.f32.mrf.mxu0
        %v1748 = vadd.f32 %v1734, %v1747
        %v1749 = vpop.f32.mrf.mxu0
        %v1750 = vadd.f32 %v1736, %v1749
        %1751 = vdwg.mxu0
        %1752 = vmatpush.bf16.msra.mxu0 %v1651
        %1753 = vmatpush.bf16.msra.mxu0 %v1650
        %1754 = vmatpush.bf16.msra.mxu0 %v1649
        %1755 = vmatpush.bf16.msra.mxu0 %v1648
        %1756 = vmatpush.bf16.msra.mxu0 %v1647
        %1757 = vmatpush.bf16.msra.mxu0 %v1646
        %1758 = vmatpush.bf16.msra.mxu0 %v1645
        %1759 = vmatpush.bf16.msra.mxu0 %v1644
        %1760 = vmatmul.bf16.gmra.mxu0 %v1332
        %v1761 = vpop.f32.mrf.mxu0
        %v1762 = vadd.f32 %v1748, %v1761
        %v1763 = vpop.f32.mrf.mxu0
        %v1764 = vadd.f32 %v1750, %v1763
        %1765 = vdwg.mxu0
        %1766 = vmatpush.bf16.msra.mxu0 %v1659
        %1767 = vmatpush.bf16.msra.mxu0 %v1658
        %1768 = vmatpush.bf16.msra.mxu0 %v1657
        %1769 = vmatpush.bf16.msra.mxu0 %v1656
        %1770 = vmatpush.bf16.msra.mxu0 %v1655
        %1771 = vmatpush.bf16.msra.mxu0 %v1654
        %1772 = vmatpush.bf16.msra.mxu0 %v1653
        %1773 = vmatpush.bf16.msra.mxu0 %v1652
        %1774 = vmatmul.bf16.gmra.mxu0 %v1333
        %v1775 = vpop.f32.mrf.mxu0
        %v1776 = vadd.f32 %v1762, %v1775
        %v1777 = vpop.f32.mrf.mxu0
        %v1778 = vadd.f32 %v1764, %v1777
        %1779 = vdwg.mxu0
        %1780 = vmatpush.bf16.msra.mxu0 %v1667
        %1781 = vmatpush.bf16.msra.mxu0 %v1666
        %1782 = vmatpush.bf16.msra.mxu0 %v1665
        %1783 = vmatpush.bf16.msra.mxu0 %v1664
        %1784 = vmatpush.bf16.msra.mxu0 %v1663
        %1785 = vmatpush.bf16.msra.mxu0 %v1662
        %1786 = vmatpush.bf16.msra.mxu0 %v1661
        %1787 = vmatpush.bf16.msra.mxu0 %v1660
        %1788 = vmatmul.bf16.gmra.mxu0 %v1334
        %v1789 = vpop.f32.mrf.mxu0
        %v1790 = vadd.f32 %v1776, %v1789
        %v1791 = vpop.f32.mrf.mxu0
        %v1792 = vadd.f32 %v1778, %v1791
        %1793 = vdwg.mxu0
        %1794 = vmatpush.bf16.msra.mxu0 %v1675
        %1795 = vmatpush.bf16.msra.mxu0 %v1674
        %1796 = vmatpush.bf16.msra.mxu0 %v1673
        %1797 = vmatpush.bf16.msra.mxu0 %v1672
        %1798 = vmatpush.bf16.msra.mxu0 %v1671
        %1799 = vmatpush.bf16.msra.mxu0 %v1670
        %1800 = vmatpush.bf16.msra.mxu0 %v1669
        %1801 = vmatpush.bf16.msra.mxu0 %v1668
        %1802 = vmatmul.bf16.gmra.mxu0 %v1335
        %v1803 = vpop.f32.mrf.mxu0
        %v1804 = vadd.f32 %v1790, %v1803
        %v1805 = vpop.f32.mrf.mxu0
        %v1806 = vadd.f32 %v1792, %v1805
        %1807 = vdwg.mxu0
        %1808 = vst [vmem:[%s389] sm:$0xff] %v1804
        %1809 = vst [vmem:[%s389 + $0x8] sm:$0xff] %v1806
        %s1810 = sand.u32 %s209, 1
        %s1811 = scalar_lea.sflag [#allocation6], %s1810
        %s1812 = sand.u32 %s209, 1
        %s1813 = smul.addr %s1812, 16
        %s1814 = scalar_lea.vmem [#allocation14], %s1813
        // Predicated region
        $region73: #{tpu_custom_call.1} parent=51 // pred_check
          %p1815 = pneg %p219
        $region74: #{tpu_custom_call.1} parent=51 // pred_check_branch
          %1817 = sbr.rel (%p1815) target = $region76
        $region75: #{tpu_custom_call.1} parent=51 // pred_region
          %1819 = vsyncadd %s1811, 0
          %s1820 = smul.addr %s28, 2
          %s1821 = smul.addr %s1820, 8
          %s1822 = scalar_lea.hbm %s8, %s1821
          %s1823 = sshll.u32 %s1814, 4
          %s1824 = int_to_ptr.vmem [resolvable:$true] %s1823
          %s1825 = sshll.u32 %s1822, 4
          %s1826 = int_to_ptr.hbm [resolvable:$true] %s1825
          %1831 = dma.vmem_to_hbm [thread:$0]  %s1824, 256, %s1826, %s1811, 128, 128, 8
        $region76: #{tpu_custom_call.1} parent=51 // pred_fallthru
          _
      $region52: #{tpu_custom_call.1} parent=5 // pred_fallthru
        _
      %p1832 = scmp.le.s32.totalorder 2, %s23
      // Predicated region
      $region77: #{tpu_custom_call.1} parent=5 // pred_check
        %p1833 = pneg %p1832
      $region78: #{tpu_custom_call.1} parent=5 // pred_check_branch
        %1835 = sbr.rel (%p1833) target = $region80
      $region79: #{tpu_custom_call.1} parent=5 // pred_region
        %s1836 = ssub.s32 %s23, 2
        // Predicated region
        $region81: #{tpu_custom_call.1} parent=79 // pred_check
          %p1837 = pneg %p225
        $region82: #{tpu_custom_call.1} parent=79 // pred_check_branch
          %1839 = sbr.rel (%p1837) target = $region84
        $region83: #{tpu_custom_call.1} parent=79 // pred_region
          %s1840 = sand.u32 %s210, 1
          %s1841 = scalar_lea.sflag [#allocation6], %s1840
          %s1842 = sand.u32 %s210, 1
          %s1843 = smul.addr %s1842, 16
          %s1844 = scalar_lea.vmem [#allocation14], %s1843
          %1846 = dma.done %s1841, 256
        $region84: #{tpu_custom_call.1} parent=79 // pred_fallthru
          _
      $region80: #{tpu_custom_call.1} parent=5 // pred_fallthru
        _
    $region6: #{tpu_custom_call.1} parent=1 // loop_footer
      %s27 = sadd.s32 1, %s23
    $region7: #{tpu_custom_call.1} parent=1 // loop_footer_branch
      %22 = sbr.rel target = $region3
    $region8: #{tpu_custom_call.1} parent=1 // loop_exit
      _
    %1847 = vsyncpa [#allocation5], 1
    %s1848 = scalar_lea.sflag [#allocation5], 1
    %1849 = vsyncpa %s1848, 1
    %1850 = vsyncpa [#allocation9], 1
    %1851 = vsyncpa [#allocation12], 1
    %1852 = vsyncpa [#allocation6], 1
    %s1853 = scalar_lea.sflag [#allocation6], 1
    %1854 = vsyncpa %s1853, 1
    %1855 = vsyncpa [#allocation7], 1
    %s1856 = scalar_lea.sflag [#allocation7], 1
    %1857 = vsyncpa %s1856, 1

</llo_original>
